<compile_context>
chip_gen: v7x
topology: tpu7x:2x2x1
jax: 0.10.0
libtpu: 0.0.40
codegen_flags: <defaults>
</compile_context>

<pallas_src>
import functools
import math

import jax
import jax.numpy as jnp
from jax.experimental import pallas as pl
from jax.experimental.pallas import tpu as pltpu

LOG_SIG_MAX = 2.0
LOG_SIG_MIN = -20.0
EPSILON = 1e-6
ACTION_SCALE = 1.0   # self.action_scale = torch.tensor(1.0)
ACTION_BIAS = 0.0    # self.action_bias  = torch.tensor(0.0)

LANE = 128           # vreg lane width; head outputs padded to this (lane-dense stores)

# MXU operand dtype.  f32 preserves the PyTorch reference numerics; flip to
# jnp.bfloat16 on v6e/v7x once M/K/N are non-trivial (accumulation stays f32
# via preferred_element_type, elementwise math stays f32 everywhere).
MXU_DTYPE = jnp.float32

_VMEM = pl.BlockSpec(memory_space=pltpu.MemorySpace.VMEM)


def _mdot(a, b):
    return jnp.dot(a.astype(MXU_DTYPE), b.astype(MXU_DTYPE),
                   preferred_element_type=jnp.float32)


# --------------------------------------------------------------------------- #
# Pallas kernels
# --------------------------------------------------------------------------- #
def _conv_gemm_kernel(x_ref, w_ref, b_ref, o_ref):
    """Fused conv-as-GEMM: ReLU(x @ w + b)."""
    o_ref[...] = jnp.maximum(_mdot(x_ref[...], w_ref[...]) + b_ref[...], 0.0)


def _trunk_kernel(*refs, mode):
    """Fused post-flatten trunk.

    mode == "forward": outputs (mean_pad, log_std_pad), each (B, LANE).
    mode == "sample" : outputs (action_pad, log_prob_pad, det_mean_pad), each (B, LANE).
    """
    if mode == "sample":
        (flat_ref, fcw_ref, fcb_ref, lng_ref, lnb_ref,
         w1_ref, b1_ref, w2_ref, b2_ref, hw_ref, hb_ref,
         noise_ref, mask_ref,
         act_ref, lp_ref, mdet_ref) = refs
    else:
        (flat_ref, fcw_ref, fcb_ref, lng_ref, lnb_ref,
         w1_ref, b1_ref, w2_ref, b2_ref, hw_ref, hb_ref,
         mean_ref, logstd_ref) = refs

    # encoder head: tanh(LayerNorm(flat @ fc_w + fc_b))
    y = _mdot(flat_ref[...], fcw_ref[...]) + fcb_ref[...]
    mu = jnp.mean(y, axis=-1, keepdims=True)
    var = jnp.mean((y - mu) ** 2, axis=-1, keepdims=True)
    feat = jnp.tanh((y - mu) * jax.lax.rsqrt(var + 1e-5) * lng_ref[...] + lnb_ref[...])

    # MLP trunk (Linear + ReLU, Linear + ReLU); intermediates stay in VMEM/vregs
    h = jnp.maximum(_mdot(feat, w1_ref[...]) + b1_ref[...], 0.0)
    h = jnp.maximum(_mdot(h, w2_ref[...]) + b2_ref[...], 0.0)

    # merged heads GEMM: columns [0:LANE) = mean (zero-padded),
    #                    columns [LANE:2*LANE) = log_std (zero-padded)
    heads = _mdot(h, hw_ref[...]) + hb_ref[...]
    mean = heads[:, :LANE]
    log_std = jnp.clip(heads[:, LANE:], LOG_SIG_MIN, LOG_SIG_MAX)

    if mode == "forward":
        mean_ref[...] = mean
        logstd_ref[...] = log_std
        return

    noise = noise_ref[...]
    mask = mask_ref[...]
    std = jnp.exp(log_std)
    x_t = mean + std * noise                       # Normal(mean, std).rsample()
    y_t = jnp.tanh(x_t)
    action = y_t * ACTION_SCALE + ACTION_BIAS
    # Normal log_prob: ((x_t - mean)/std) == noise exactly, so use noise directly.
    log_prob = (-0.5 * noise * noise - log_std - 0.5 * math.log(2.0 * math.pi)
                - jnp.log(ACTION_SCALE * (1.0 - y_t * y_t) + EPSILON))
    log_prob = log_prob * mask                     # padded columns have mask = 0
    lp = jnp.sum(log_prob, axis=-1, keepdims=True)

    act_ref[...] = action * mask
    lp_ref[...] = jnp.broadcast_to(lp, lp_ref.shape)   # lane-dense; col 0 holds the value
    mdet_ref[...] = (jnp.tanh(mean) * ACTION_SCALE + ACTION_BIAS) * mask


# --------------------------------------------------------------------------- #
# Pallas wrappers
# --------------------------------------------------------------------------- #
def conv_gemm_relu(x, w, b, *, tile_m=512):
    """ReLU(x @ w + b).  Single whole-array VMEM block when M is small;
    M-tiled parallel grid otherwise (v7x: 64 MiB VMEM, 2 TensorCores)."""
    M, K = x.shape
    N = w.shape[1]
    if M <= tile_m:
        return pl.pallas_call(
            _conv_gemm_kernel,
            out_shape=jax.ShapeDtypeStruct((M, N), jnp.float32),
            in_specs=[_VMEM, _VMEM, _VMEM],
            out_specs=_VMEM,
        )(x, w, b)

    mp = pl.cdiv(M, tile_m) * tile_m
    if mp != M:
        x = jnp.pad(x, ((0, mp - M), (0, 0)))
    out = pl.pallas_call(
        _conv_gemm_kernel,
        out_shape=jax.ShapeDtypeStruct((mp, N), jnp.float32),
        grid=(mp // tile_m,),
        in_specs=[pl.BlockSpec((tile_m, K), lambda i: (i, 0)),
                  pl.BlockSpec((K, N), lambda i: (0, 0)),
                  pl.BlockSpec((1, N), lambda i: (0, 0))],
        out_specs=pl.BlockSpec((tile_m, N), lambda i: (i, 0)),
        compiler_params=pltpu.CompilerParams(
            dimension_semantics=("parallel",),
            vmem_limit_bytes=48 * 1024 * 1024),
    )(x, w, b)
    return out[:M]


def _trunk_args(params, flat):
    return (flat,
            params["fc_w"], params["fc_b"], params["ln_g"], params["ln_b"],
            params["mlp1_w"], params["mlp1_b"], params["mlp2_w"], params["mlp2_b"],
            params["heads_w"], params["heads_b"])


def trunk_forward(params, flat):
    B = flat.shape[0]
    args = _trunk_args(params, flat)
    return pl.pallas_call(
        functools.partial(_trunk_kernel, mode="forward"),
        out_shape=(jax.ShapeDtypeStruct((B, LANE), jnp.float32),   # mean (padded)
                   jax.ShapeDtypeStruct((B, LANE), jnp.float32)),  # log_std (padded)
        in_specs=[_VMEM] * len(args),
        out_specs=(_VMEM, _VMEM),
    )(*args)


def trunk_sample(params, flat, noise_pad, mask_pad):
    B = flat.shape[0]
    args = _trunk_args(params, flat) + (noise_pad, mask_pad)
    return pl.pallas_call(
        functools.partial(_trunk_kernel, mode="sample"),
        out_shape=(jax.ShapeDtypeStruct((B, LANE), jnp.float32),   # action (padded)
                   jax.ShapeDtypeStruct((B, LANE), jnp.float32),   # log_prob (lane-dense)
                   jax.ShapeDtypeStruct((B, LANE), jnp.float32)),  # det. mean (padded)
        in_specs=[_VMEM] * len(args),
        out_specs=(_VMEM, _VMEM, _VMEM),
    )(*args)


# --------------------------------------------------------------------------- #
# im2col glue (plain JAX: slicing + reshape only)
# --------------------------------------------------------------------------- #
def im2col(x, ksize, stride):
    """x: (B, H, W, C) -> (B*oh*ow, ksize*ksize*C), patch order (kh, kw, C)."""
    B, H, W, C = x.shape
    oh = (H - ksize) // stride + 1
    ow = (W - ksize) // stride + 1
    cols = []
    for i in range(ksize):
        for j in range(ksize):
            cols.append(x[:, i:i + stride * oh:stride, j:j + stride * ow:stride, :])
    cols = jnp.concatenate(cols, axis=-1)
    return cols.reshape(B * oh * ow, ksize * ksize * C), oh, ow


# --------------------------------------------------------------------------- #
# Parameter init (deterministic; mirrors weight_init in the reference)
# --------------------------------------------------------------------------- #
def xavier_uniform(key, fan_in, fan_out):
    limit = math.sqrt(6.0 / (fan_in + fan_out))
    return jax.random.uniform(key, (fan_in, fan_out), jnp.float32, -limit, limit)


def orthogonal(key, fan_in, fan_out, gain):
    return jax.nn.initializers.orthogonal(scale=gain)(key, (fan_in, fan_out), jnp.float32)


def init_params(key, in_ch, conv_flat, feature_dim, hidden_dim, action_dim,
                num_filters=32):
    ks = jax.random.split(key, 8)
    relu_gain = math.sqrt(2.0)  # nn.init.calculate_gain('relu')
    p = {}
    # Encoder convs (orthogonal, gain sqrt(2), bias 0); weights stored (kh*kw*Cin, O)
    p["conv1_w"] = orthogonal(ks[0], 9 * in_ch, num_filters, relu_gain)
    p["conv1_b"] = jnp.zeros((1, num_filters), jnp.float32)
    p["conv2_w"] = orthogonal(ks[1], 9 * num_filters, num_filters, relu_gain)
    p["conv2_b"] = jnp.zeros((1, num_filters), jnp.float32)
    # Encoder fc (xavier_uniform, bias 0) + LayerNorm (gamma 1, beta 0)
    # NOTE: fc_w is initialized for NHWC flatten order (self-consistent; porting
    # PyTorch NCHW weights would require a permutation).
    p["fc_w"] = xavier_uniform(ks[2], conv_flat, feature_dim)
    p["fc_b"] = jnp.zeros((1, feature_dim), jnp.float32)
    p["ln_g"] = jnp.ones((1, feature_dim), jnp.float32)
    p["ln_b"] = jnp.zeros((1, feature_dim), jnp.float32)
    # MLP
    p["mlp1_w"] = xavier_uniform(ks[3], feature_dim, hidden_dim)
    p["mlp1_b"] = jnp.zeros((1, hidden_dim), jnp.float32)
    p["mlp2_w"] = xavier_uniform(ks[4], hidden_dim, hidden_dim)
    p["mlp2_b"] = jnp.zeros((1, hidden_dim), jnp.float32)
    # Heads: merged + lane-padded.  cols [0:A)=mean_w, [LANE:LANE+A)=logstd_w.
    mean_w = xavier_uniform(ks[5], hidden_dim, action_dim)
    logstd_w = xavier_uniform(ks[6], hidden_dim, action_dim)
    heads_w = jnp.zeros((hidden_dim, 2 * LANE), jnp.float32)
    heads_w = heads_w.at[:, :action_dim].set(mean_w)
    heads_w = heads_w.at[:, LANE:LANE + action_dim].set(logstd_w)
    p["heads_w"] = heads_w
    p["heads_b"] = jnp.zeros((1, 2 * LANE), jnp.float32)
    return p


# --------------------------------------------------------------------------- #
# GaussianPolicy forward / sample
# --------------------------------------------------------------------------- #
def encode(params, obs, goal_obs, num_filters=32):
    # obs, goal_obs: NCHW (B, C, H, W), same as the PyTorch module.
    x = jnp.concatenate([obs, goal_obs], axis=1)              # torch.cat(dim=1)
    x = jnp.transpose(x, (0, 2, 3, 1)).astype(jnp.float32)    # NHWC kernel path
    B = x.shape[0]
    # conv(3x3, stride 2) + ReLU
    cols, oh, ow = im2col(x, 3, 2)
    y = conv_gemm_relu(cols, params["conv1_w"], params["conv1_b"])
    x = y.reshape(B, oh, ow, num_filters)
    # conv(3x3, stride 1) + ReLU
    cols, oh, ow = im2col(x, 3, 1)
    y = conv_gemm_relu(cols, params["conv2_w"], params["conv2_b"])
    return y.reshape(B, -1)                                   # NHWC flatten


def gaussian_policy_forward(params, obs, goal_obs, action_dim, num_filters=32):
    flat = encode(params, obs, goal_obs, num_filters)
    mean_p, logstd_p = trunk_forward(params, flat)
    return mean_p[:, :action_dim], logstd_p[:, :action_dim]


def gaussian_policy_sample(params, obs, goal_obs, noise, action_mask, num_filters=32):
    B, A = noise.shape
    flat = encode(params, obs, goal_obs, num_filters)
    noise_pad = jnp.zeros((B, LANE), jnp.float32).at[:, :A].set(noise)
    mask_pad = jnp.zeros((1, LANE), jnp.float32).at[:, :A].set(
        action_mask.reshape(1, A).astype(jnp.float32))
    act_p, lp_p, mdet_p = trunk_sample(params, flat, noise_pad, mask_pad)
    return act_p[:, :A], lp_p[:, :1], mdet_p[:, :A]


# --------------------------------------------------------------------------- #
if __name__ == "__main__":
    key = jax.random.PRNGKey(0)
    k_obs, k_goal, k_noise, k_param = jax.random.split(key, 4)

    # Small shapes: batch=2, per-input channels=2 (concat -> 4), spatial 16x16
    B, C, H, W = 2, 2, 16, 16
    feature_dim, hidden_dim, action_dim = 32, 32, 6
    num_filters = 32

    obs = jax.random.normal(k_obs, (B, C, H, W), jnp.float32)
    goal_obs = jax.random.normal(k_goal, (B, C, H, W), jnp.float32)
    noise = jax.random.normal(k_noise, (B, action_dim), jnp.float32)
    action_mask = jnp.array([[1.0, 1.0, 1.0, 1.0, 0.0, 1.0]], jnp.float32)

    # Encoder output spatial size: 16 ->(3x3,s2) 7 ->(3x3,s1) 5
    conv_flat = num_filters * 5 * 5
    params = init_params(k_param, 2 * C, conv_flat, feature_dim, hidden_dim,
                         action_dim, num_filters)

    fwd_fn = jax.jit(lambda p, o, g: gaussian_policy_forward(p, o, g, action_dim))
    sample_fn = jax.jit(gaussian_policy_sample)

    mean, log_std = fwd_fn(params, obs, goal_obs)
    action, log_prob, det_mean = sample_fn(params, obs, goal_obs, noise, action_mask)

    jax.block_until_ready((mean, log_std, action, log_prob, det_mean))

    assert mean.shape == (B, action_dim)
    assert log_std.shape == (B, action_dim)
    assert action.shape == (B, action_dim)
    assert log_prob.shape == (B, 1)
    assert det_mean.shape == (B, action_dim)
    assert bool(jnp.all(log_std >= LOG_SIG_MIN)) and bool(jnp.all(log_std <= LOG_SIG_MAX))
    assert bool(jnp.all(jnp.isfinite(action))) and bool(jnp.all(jnp.isfinite(log_prob)))
    # masked action component must be exactly zero
    assert bool(jnp.all(action[:, 4] == 0.0)) and bool(jnp.all(det_mean[:, 4] == 0.0))

    print("KERNEL_OK")
</pallas_src>

<mosaic_0001>
module attributes {stable_mosaic.version = 11 : i64} {
  func.func @_conv_gemm_kernel(%arg0: memref<98x36xf32, #tpu.memory_space<vmem>>, %arg1: memref<36x32xf32, #tpu.memory_space<vmem>>, %arg2: memref<1x32xf32, #tpu.memory_space<vmem>>, %arg3: memref<98x32xf32, #tpu.memory_space<vmem>>) attributes {dimension_semantics = [], scalar_prefetch = 0 : i64, scratch_operands = 0 : i64, tpu.core_type = #tpu.core_type<tc>} {
    %c0 = arith.constant 0 : index
    %c0_0 = arith.constant 0 : index
    %0 = vector.load %arg0[%c0, %c0_0] : memref<98x36xf32, #tpu.memory_space<vmem>>, vector<98x36xf32>
    %c0_1 = arith.constant 0 : index
    %c0_2 = arith.constant 0 : index
    %1 = vector.load %arg1[%c0_1, %c0_2] : memref<36x32xf32, #tpu.memory_space<vmem>>, vector<36x32xf32>
    %cst = arith.constant dense<0.000000e+00> : vector<98x32xf32>
    %2 = tpu.matmul %0, %1, %cst {dimension_numbers = #tpu.dot_dimension_numbers<[1], [0], [0], [1], [0, 0, 1, 1], [], []>} : vector<98x36xf32>, vector<36x32xf32>, vector<98x32xf32> -> vector<98x32xf32>
    %c0_3 = arith.constant 0 : index
    %c0_4 = arith.constant 0 : index
    %3 = vector.load %arg2[%c0_3, %c0_4] : memref<1x32xf32, #tpu.memory_space<vmem>>, vector<1x32xf32>
    %4 = vector.broadcast %3 : vector<1x32xf32> to vector<98x32xf32>
    %5 = arith.addf %2, %4 : vector<98x32xf32>
    %cst_5 = arith.constant 0.000000e+00 : f32
    %6 = vector.broadcast %cst_5 : f32 to vector<98x32xf32>
    %7 = arith.maximumf %5, %6 : vector<98x32xf32>
    %c0_6 = arith.constant 0 : index
    %c0_7 = arith.constant 0 : index
    %8 = vector.load %arg3[%c0_6, %c0_7] : memref<98x32xf32, #tpu.memory_space<vmem>>, vector<98x32xf32>
    tpu.vector_store %arg3[%c0_6, %c0_7], %7 {strides = array<i32>} : memref<98x32xf32, #tpu.memory_space<vmem>>, vector<98x32xf32>,
    return
  }
}

module attributes {stable_mosaic.version = 11 : i64} {
  func.func @_conv_gemm_kernel(%arg0: memref<50x288xf32, #tpu.memory_space<vmem>>, %arg1: memref<288x32xf32, #tpu.memory_space<vmem>>, %arg2: memref<1x32xf32, #tpu.memory_space<vmem>>, %arg3: memref<50x32xf32, #tpu.memory_space<vmem>>) attributes {dimension_semantics = [], scalar_prefetch = 0 : i64, scratch_operands = 0 : i64, tpu.core_type = #tpu.core_type<tc>} {
    %c0 = arith.constant 0 : index
    %c0_0 = arith.constant 0 : index
    %0 = vector.load %arg0[%c0, %c0_0] : memref<50x288xf32, #tpu.memory_space<vmem>>, vector<50x288xf32>
    %c0_1 = arith.constant 0 : index
    %c0_2 = arith.constant 0 : index
    %1 = vector.load %arg1[%c0_1, %c0_2] : memref<288x32xf32, #tpu.memory_space<vmem>>, vector<288x32xf32>
    %cst = arith.constant dense<0.000000e+00> : vector<50x32xf32>
    %2 = tpu.matmul %0, %1, %cst {dimension_numbers = #tpu.dot_dimension_numbers<[1], [0], [0], [1], [0, 0, 1, 1], [], []>} : vector<50x288xf32>, vector<288x32xf32>, vector<50x32xf32> -> vector<50x32xf32>
    %c0_3 = arith.constant 0 : index
    %c0_4 = arith.constant 0 : index
    %3 = vector.load %arg2[%c0_3, %c0_4] : memref<1x32xf32, #tpu.memory_space<vmem>>, vector<1x32xf32>
    %4 = vector.broadcast %3 : vector<1x32xf32> to vector<50x32xf32>
    %5 = arith.addf %2, %4 : vector<50x32xf32>
    %cst_5 = arith.constant 0.000000e+00 : f32
    %6 = vector.broadcast %cst_5 : f32 to vector<50x32xf32>
    %7 = arith.maximumf %5, %6 : vector<50x32xf32>
    %c0_6 = arith.constant 0 : index
    %c0_7 = arith.constant 0 : index
    %8 = vector.load %arg3[%c0_6, %c0_7] : memref<50x32xf32, #tpu.memory_space<vmem>>, vector<50x32xf32>
    tpu.vector_store %arg3[%c0_6, %c0_7], %7 {strides = array<i32>} : memref<50x32xf32, #tpu.memory_space<vmem>>, vector<50x32xf32>,
    return
  }
}

module attributes {stable_mosaic.version = 11 : i64} {
  func.func @_trunk_kernel(%arg0: memref<2x800xf32, #tpu.memory_space<vmem>>, %arg1: memref<800x32xf32, #tpu.memory_space<vmem>>, %arg2: memref<1x32xf32, #tpu.memory_space<vmem>>, %arg3: memref<1x32xf32, #tpu.memory_space<vmem>>, %arg4: memref<1x32xf32, #tpu.memory_space<vmem>>, %arg5: memref<32x32xf32, #tpu.memory_space<vmem>>, %arg6: memref<1x32xf32, #tpu.memory_space<vmem>>, %arg7: memref<32x32xf32, #tpu.memory_space<vmem>>, %arg8: memref<1x32xf32, #tpu.memory_space<vmem>>, %arg9: memref<32x256xf32, #tpu.memory_space<vmem>>, %arg10: memref<1x256xf32, #tpu.memory_space<vmem>>, %arg11: memref<2x128xf32, #tpu.memory_space<vmem>>, %arg12: memref<2x128xf32, #tpu.memory_space<vmem>>) attributes {dimension_semantics = [], scalar_prefetch = 0 : i64, scratch_operands = 0 : i64, tpu.core_type = #tpu.core_type<tc>} {
    %c0 = arith.constant 0 : index
    %c0_0 = arith.constant 0 : index
    %0 = vector.load %arg0[%c0, %c0_0] : memref<2x800xf32, #tpu.memory_space<vmem>>, vector<2x800xf32>
    %c0_1 = arith.constant 0 : index
    %c0_2 = arith.constant 0 : index
    %1 = vector.load %arg1[%c0_1, %c0_2] : memref<800x32xf32, #tpu.memory_space<vmem>>, vector<800x32xf32>
    %cst = arith.constant dense<0.000000e+00> : vector<2x32xf32>
    %2 = tpu.matmul %0, %1, %cst {dimension_numbers = #tpu.dot_dimension_numbers<[1], [0], [0], [1], [0, 0, 1, 1], [], []>} : vector<2x800xf32>, vector<800x32xf32>, vector<2x32xf32> -> vector<2x32xf32>
    %c0_3 = arith.constant 0 : index
    %c0_4 = arith.constant 0 : index
    %3 = vector.load %arg2[%c0_3, %c0_4] : memref<1x32xf32, #tpu.memory_space<vmem>>, vector<1x32xf32>
    %4 = vector.broadcast %3 : vector<1x32xf32> to vector<2x32xf32>
    %5 = arith.addf %2, %4 : vector<2x32xf32>
    %cst_5 = arith.constant dense<0.000000e+00> : vector<2xf32>
    %6 = vector.multi_reduction <add>, %5, %cst_5 [1] : vector<2x32xf32> to vector<2xf32>
    %7 = vector.shape_cast %6 : vector<2xf32> to vector<2x1xf32>
    %cst_6 = arith.constant 3.200000e+01 : f32
    %8 = vector.broadcast %cst_6 : f32 to vector<2x1xf32>
    %9 = arith.divf %7, %8 : vector<2x1xf32>
    %10 = vector.broadcast %9 : vector<2x1xf32> to vector<2x32xf32>
    %11 = arith.subf %5, %10 : vector<2x32xf32>
    %12 = arith.mulf %11, %11 : vector<2x32xf32>
    %cst_7 = arith.constant dense<0.000000e+00> : vector<2xf32>
    %13 = vector.multi_reduction <add>, %12, %cst_7 [1] : vector<2x32xf32> to vector<2xf32>
    %14 = vector.shape_cast %13 : vector<2xf32> to vector<2x1xf32>
    %cst_8 = arith.constant 3.200000e+01 : f32
    %15 = vector.broadcast %cst_8 : f32 to vector<2x1xf32>
    %16 = arith.divf %14, %15 : vector<2x1xf32>
    %17 = vector.broadcast %9 : vector<2x1xf32> to vector<2x32xf32>
    %18 = arith.subf %5, %17 : vector<2x32xf32>
    %cst_9 = arith.constant 9.99999974E-6 : f32
    %19 = vector.broadcast %cst_9 : f32 to vector<2x1xf32>
    %20 = arith.addf %16, %19 : vector<2x1xf32>
    %21 = math.rsqrt %20 : vector<2x1xf32>
    %22 = vector.broadcast %21 : vector<2x1xf32> to vector<2x32xf32>
    %23 = arith.mulf %18, %22 : vector<2x32xf32>
    %c0_10 = arith.constant 0 : index
    %c0_11 = arith.constant 0 : index
    %24 = vector.load %arg3[%c0_10, %c0_11] : memref<1x32xf32, #tpu.memory_space<vmem>>, vector<1x32xf32>
    %25 = vector.broadcast %24 : vector<1x32xf32> to vector<2x32xf32>
    %26 = arith.mulf %23, %25 : vector<2x32xf32>
    %c0_12 = arith.constant 0 : index
    %c0_13 = arith.constant 0 : index
    %27 = vector.load %arg4[%c0_12, %c0_13] : memref<1x32xf32, #tpu.memory_space<vmem>>, vector<1x32xf32>
    %28 = vector.broadcast %27 : vector<1x32xf32> to vector<2x32xf32>
    %29 = arith.addf %26, %28 : vector<2x32xf32>
    %30 = math.tanh %29 : vector<2x32xf32>
    %c0_14 = arith.constant 0 : index
    %c0_15 = arith.constant 0 : index
    %31 = vector.load %arg5[%c0_14, %c0_15] : memref<32x32xf32, #tpu.memory_space<vmem>>, vector<32x32xf32>
    %cst_16 = arith.constant dense<0.000000e+00> : vector<2x32xf32>
    %32 = tpu.matmul %30, %31, %cst_16 {dimension_numbers = #tpu.dot_dimension_numbers<[1], [0], [0], [1], [0, 0, 1, 1], [], []>} : vector<2x32xf32>, vector<32x32xf32>, vector<2x32xf32> -> vector<2x32xf32>
    %c0_17 = arith.constant 0 : index
    %c0_18 = arith.constant 0 : index
    %33 = vector.load %arg6[%c0_17, %c0_18] : memref<1x32xf32, #tpu.memory_space<vmem>>, vector<1x32xf32>
    %34 = vector.broadcast %33 : vector<1x32xf32> to vector<2x32xf32>
    %35 = arith.addf %32, %34 : vector<2x32xf32>
    %cst_19 = arith.constant 0.000000e+00 : f32
    %36 = vector.broadcast %cst_19 : f32 to vector<2x32xf32>
    %37 = arith.maximumf %35, %36 : vector<2x32xf32>
    %c0_20 = arith.constant 0 : index
    %c0_21 = arith.constant 0 : index
    %38 = vector.load %arg7[%c0_20, %c0_21] : memref<32x32xf32, #tpu.memory_space<vmem>>, vector<32x32xf32>
    %cst_22 = arith.constant dense<0.000000e+00> : vector<2x32xf32>
    %39 = tpu.matmul %37, %38, %cst_22 {dimension_numbers = #tpu.dot_dimension_numbers<[1], [0], [0], [1], [0, 0, 1, 1], [], []>} : vector<2x32xf32>, vector<32x32xf32>, vector<2x32xf32> -> vector<2x32xf32>
    %c0_23 = arith.constant 0 : index
    %c0_24 = arith.constant 0 : index
    %40 = vector.load %arg8[%c0_23, %c0_24] : memref<1x32xf32, #tpu.memory_space<vmem>>, vector<1x32xf32>
    %41 = vector.broadcast %40 : vector<1x32xf32> to vector<2x32xf32>
    %42 = arith.addf %39, %41 : vector<2x32xf32>
    %cst_25 = arith.constant 0.000000e+00 : f32
    %43 = vector.broadcast %cst_25 : f32 to vector<2x32xf32>
    %44 = arith.maximumf %42, %43 : vector<2x32xf32>
    %c0_26 = arith.constant 0 : index
    %c0_27 = arith.constant 0 : index
    %45 = vector.load %arg9[%c0_26, %c0_27] : memref<32x256xf32, #tpu.memory_space<vmem>>, vector<32x256xf32>
    %cst_28 = arith.constant dense<0.000000e+00> : vector<2x256xf32>
    %46 = tpu.matmul %44, %45, %cst_28 {dimension_numbers = #tpu.dot_dimension_numbers<[1], [0], [0], [1], [0, 0, 1, 1], [], []>} : vector<2x32xf32>, vector<32x256xf32>, vector<2x256xf32> -> vector<2x256xf32>
    %c0_29 = arith.constant 0 : index
    %c0_30 = arith.constant 0 : index
    %47 = vector.load %arg10[%c0_29, %c0_30] : memref<1x256xf32, #tpu.memory_space<vmem>>, vector<1x256xf32>
    %48 = vector.broadcast %47 : vector<1x256xf32> to vector<2x256xf32>
    %49 = arith.addf %46, %48 : vector<2x256xf32>
    %50 = vector.extract_strided_slice %49 {offsets = [0, 0], sizes = [2, 128], strides = [1, 1]} : vector<2x256xf32> to vector<2x128xf32>
    %51 = vector.extract_strided_slice %49 {offsets = [0, 128], sizes = [2, 128], strides = [1, 1]} : vector<2x256xf32> to vector<2x128xf32>
    %cst_31 = arith.constant -2.000000e+01 : f32
    %cst_32 = arith.constant 2.000000e+00 : f32
    %52 = vector.broadcast %cst_31 : f32 to vector<2x128xf32>
    %53 = arith.maximumf %52, %51 : vector<2x128xf32>
    %54 = vector.broadcast %cst_32 : f32 to vector<2x128xf32>
    %55 = arith.minimumf %54, %53 : vector<2x128xf32>
    %c0_33 = arith.constant 0 : index
    %c0_34 = arith.constant 0 : index
    %56 = vector.load %arg11[%c0_33, %c0_34] : memref<2x128xf32, #tpu.memory_space<vmem>>, vector<2x128xf32>
    tpu.vector_store %arg11[%c0_33, %c0_34], %50 {strides = array<i32>} : memref<2x128xf32, #tpu.memory_space<vmem>>, vector<2x128xf32>,
    %c0_35 = arith.constant 0 : index
    %c0_36 = arith.constant 0 : index
    %57 = vector.load %arg12[%c0_35, %c0_36] : memref<2x128xf32, #tpu.memory_space<vmem>>, vector<2x128xf32>
    tpu.vector_store %arg12[%c0_35, %c0_36], %55 {strides = array<i32>} : memref<2x128xf32, #tpu.memory_space<vmem>>, vector<2x128xf32>,
    return
  }
}

</mosaic_0001>

<llo_original>
// kernel: _lambda_.4
$region0: #{_lambda_.4}
  #allocation0 [shape = 'u32[]', space=smem, size = 0x4, offset = 0x4, fixed_abs, tag = 'smem constant byte address 0x4 - core index']
  #allocation1 [shape = 'u32[144,128]{1,0:T(1,128)}', space=vmem, size = 0x12000, scoped, tag = 'internal scratch']
  %s0 = inlined_call_operand.vmem [shape: f32[50,288], index: 0, kind: input, shape index: {}]
  %s1 = inlined_call_operand.vmem [shape: f32[288,32], index: 1, kind: input, shape index: {}]
  %s2 = inlined_call_operand.vmem [shape: f32[1,32], index: 2, kind: input, shape index: {}]
  %s3 = inlined_call_operand.vmem [shape: f32[50,32], index: 3, kind: output, shape index: {}]
  %s4 = sld [smem:[#allocation0]]
  $region22: #{_lambda_.4} parent=0
    _
  %s6 = ssub.s32 1, %s4
  %s7 = scalar_select 0, %s6, %s4
  // Predicated region
  $region2: #{_lambda_.4} parent=0 // pred_check
    _
  $region3: #{_lambda_.4} parent=0 // pred_check_branch
    %9 = sbr.rel (0) target = $region5
  $region4: #{_lambda_.4} parent=0 // pred_region
    _
  $region5: #{_lambda_.4} parent=0 // pred_fallthru
    _
  // Predicated region
  $region6: #{_lambda_.4} parent=0 // pred_check
    _
  $region7: #{_lambda_.4} parent=0 // pred_check_branch
    %11 = sbr.rel (0) target = $region9
  $region8: #{_lambda_.4} parent=0 // pred_region
    _
  $region9: #{_lambda_.4} parent=0 // pred_fallthru
    _
  // Predicated region
  $region10: #{_lambda_.4} parent=0 // pred_check
    _
  $region11: #{_lambda_.4} parent=0 // pred_check_branch
    %13 = sbr.rel (0) target = $region13
  $region12: #{_lambda_.4} parent=0 // pred_region
    _
  $region13: #{_lambda_.4} parent=0 // pred_fallthru
    _
  %v14 = vld [vmem:[%s0] sm:$0xff]
  %v15 = vld [vmem:[%s0 + $0x8] sm:$0xff]
  %v16 = vld [vmem:[%s0 + $0x10] sm:$0xff]
  %v17 = vld [vmem:[%s0 + $0x18] sm:$0xff]
  %v18 = vld [vmem:[%s0 + $0x20] sm:$0xff]
  %v19 = vld [vmem:[%s0 + $0x28] sm:$0xff]
  %v20 = vld [vmem:[%s0 + $0x30] sm:$0xff]
  %v21 = vld [vmem:[%s0 + $0x38] sm:$0xff]
  %v22 = vld [vmem:[%s0 + $0x40] sm:$0xff]
  %v23 = vld [vmem:[%s0 + $0x48] sm:$0xff]
  %v24 = vld [vmem:[%s0 + $0x50] sm:$0xff]
  %v25 = vld [vmem:[%s0 + $0x58] sm:$0xff]
  %v26 = vld [vmem:[%s0 + $0x60] sm:$0xff]
  %v27 = vld [vmem:[%s0 + $0x68] sm:$0xff]
  %v28 = vld [vmem:[%s0 + $0x70] sm:$0xff]
  %v29 = vld [vmem:[%s0 + $0x78] sm:$0xff]
  %v30 = vld [vmem:[%s0 + $0x80] sm:$0xff]
  %v31 = vld [vmem:[%s0 + $0x88] sm:$0xff]
  %v32 = vld [vmem:[%s0 + $0x90] sm:$0x3]
  %v33 = vld [vmem:[%s0 + $0x98] sm:$0x3]
  %v34 = vld [vmem:[%s0 + $0xa0] sm:$0x3]
  %v35 = vld [vmem:[%s1] sm:$0xff]
  %v36 = vld [vmem:[%s1 + $0x8] sm:$0xff]
  %v37 = vld [vmem:[%s1 + $0x10] sm:$0xff]
  %v38 = vld [vmem:[%s1 + $0x18] sm:$0xff]
  %v39 = vld [vmem:[%s1 + $0x20] sm:$0xff]
  %v40 = vld [vmem:[%s1 + $0x28] sm:$0xff]
  %v41 = vld [vmem:[%s1 + $0x30] sm:$0xff]
  %v42 = vld [vmem:[%s1 + $0x38] sm:$0xff]
  %v43 = vld [vmem:[%s1 + $0x40] sm:$0xff]
  %v44 = vld [vmem:[%s1 + $0x48] sm:$0xff]
  %v45 = vld [vmem:[%s1 + $0x50] sm:$0xff]
  %v46 = vld [vmem:[%s1 + $0x58] sm:$0xff]
  %v47 = vld [vmem:[%s1 + $0x60] sm:$0xff]
  %v48 = vld [vmem:[%s1 + $0x68] sm:$0xff]
  %v49 = vld [vmem:[%s1 + $0x70] sm:$0xff]
  %v50 = vld [vmem:[%s1 + $0x78] sm:$0xff]
  %v51 = vld [vmem:[%s1 + $0x80] sm:$0xff]
  %v52 = vld [vmem:[%s1 + $0x88] sm:$0xff]
  %v53 = vld [vmem:[%s1 + $0x90] sm:$0xff]
  %v54 = vld [vmem:[%s1 + $0x98] sm:$0xff]
  %v55 = vld [vmem:[%s1 + $0xa0] sm:$0xff]
  %v56 = vld [vmem:[%s1 + $0xa8] sm:$0xff]
  %v57 = vld [vmem:[%s1 + $0xb0] sm:$0xff]
  %v58 = vld [vmem:[%s1 + $0xb8] sm:$0xff]
  %v59 = vld [vmem:[%s1 + $0xc0] sm:$0xff]
  %v60 = vld [vmem:[%s1 + $0xc8] sm:$0xff]
  %v61 = vld [vmem:[%s1 + $0xd0] sm:$0xff]
  %v62 = vld [vmem:[%s1 + $0xd8] sm:$0xff]
  %v63 = vld [vmem:[%s1 + $0xe0] sm:$0xff]
  %v64 = vld [vmem:[%s1 + $0xe8] sm:$0xff]
  %v65 = vld [vmem:[%s1 + $0xf0] sm:$0xff]
  %v66 = vld [vmem:[%s1 + $0xf8] sm:$0xff]
  %v67 = vld [vmem:[%s1 + $0x100] sm:$0xff]
  %v68 = vld [vmem:[%s1 + $0x108] sm:$0xff]
  %v69 = vld [vmem:[%s1 + $0x110] sm:$0xff]
  %v70 = vld [vmem:[%s1 + $0x118] sm:$0xff]
  %v71 = vld [vmem:[%s2] sm:$0x1]
  %v73 = vlaneseq
  %v74 = vshrl.u32 %v73, 7
  %v75 = vsub.s32 0, %v74
  %v76 = vrot.slane %v71, %v75
  %vm78 = vcmask 261120
  %v80 = vsel %vm78, %v16, 0
  %v83 = vsel %vm78, %v19, 0
  %v86 = vsel %vm78, %v22, 0
  %v89 = vsel %vm78, %v25, 0
  %v92 = vsel %vm78, %v28, 0
  %v95 = vsel %vm78, %v31, 0
  %v98 = vsel %vm78, %v34, 0
  %100 = vmatprep.subr.mxu0 0.0
  %101 = vmatpush1.msra.mxu0 %v35
  %102 = vmatprep.subr.mxu0 0.0
  %103 = vmatpush1.msra.mxu0 %v36
  %104 = vmatprep.subr.mxu0 0.0
  %105 = vmatpush1.msra.mxu0 %v37
  %106 = vmatprep.subr.mxu0 0.0
  %107 = vmatpush1.msra.mxu0 %v38
  %108 = vmatprep.subr.mxu0 0.0
  %109 = vmatpush1.msra.mxu0 %v39
  %110 = vmatprep.subr.mxu0 0.0
  %111 = vmatpush1.msra.mxu0 %v40
  %112 = vmatprep.subr.mxu0 0.0
  %113 = vmatpush1.msra.mxu0 %v41
  %114 = vmatprep.subr.mxu0 0.0
  %115 = vmatpush1.msra.mxu0 %v42
  %116 = vmatprep.subr.mxu0 0.0
  %117 = vmatpush1.msra.mxu0 %v43
  %118 = vmatprep.subr.mxu0 0.0
  %119 = vmatpush1.msra.mxu0 %v44
  %120 = vmatprep.subr.mxu0 0.0
  %121 = vmatpush1.msra.mxu0 %v45
  %122 = vmatprep.subr.mxu0 0.0
  %123 = vmatpush1.msra.mxu0 %v46
  %124 = vmatprep.subr.mxu0 0.0
  %125 = vmatpush1.msra.mxu0 %v47
  %126 = vmatprep.subr.mxu0 0.0
  %127 = vmatpush1.msra.mxu0 %v48
  %128 = vmatprep.subr.mxu0 0.0
  %129 = vmatpush1.msra.mxu0 %v49
  %130 = vmatprep.subr.mxu0 0.0
  %131 = vmatpush1.msra.mxu0 %v50
  %132 = vmatprep.subr.mxu0 0.0
  %133 = vmatpush1.msra.mxu0 %v51
  %134 = vmatprep.subr.mxu0 0.0
  %135 = vmatpush1.msra.mxu0 %v52
  %136 = vmatprep.subr.mxu0 0.0
  %137 = vmatpush1.msra.mxu0 %v53
  %138 = vmatprep.subr.mxu0 0.0
  %139 = vmatpush1.msra.mxu0 %v54
  %140 = vmatprep.subr.mxu0 0.0
  %141 = vmatpush1.msra.mxu0 %v55
  %142 = vmatprep.subr.mxu0 0.0
  %143 = vmatpush1.msra.mxu0 %v56
  %144 = vmatprep.subr.mxu0 0.0
  %145 = vmatpush1.msra.mxu0 %v57
  %146 = vmatprep.subr.mxu0 0.0
  %147 = vmatpush1.msra.mxu0 %v58
  %148 = vmatprep.subr.mxu0 0.0
  %149 = vmatpush1.msra.mxu0 %v59
  %150 = vmatprep.subr.mxu0 0.0
  %151 = vmatpush1.msra.mxu0 %v60
  %152 = vmatprep.subr.mxu0 0.0
  %153 = vmatpush1.msra.mxu0 %v61
  %154 = vmatprep.subr.mxu0 0.0
  %155 = vmatpush1.msra.mxu0 %v62
  %156 = vmatprep.subr.mxu0 0.0
  %157 = vmatpush1.msra.mxu0 %v63
  %158 = vmatprep.subr.mxu0 0.0
  %159 = vmatpush1.msra.mxu0 %v64
  %160 = vmatprep.subr.mxu0 0.0
  %161 = vmatpush1.msra.mxu0 %v65
  %162 = vmatprep.subr.mxu0 0.0
  %163 = vmatpush1.msra.mxu0 %v66
  %164 = vmatprep.mubr.f32.mxu0 %v15
  %165 = vmatmul.mubr.f32.gmra.mrb[0].mxu0 %v14
  %v166 = vpop.f32.mrb[0].mxu0
  %v167 = vadd.f32 %v76, %v166
  %v168 = vpop.f32.mrb[0].mxu0
  %169 = vmatprep.mubr.f32.mxu0 %v18
  %170 = vmatmul.mubr.f32.gmra.mrb[0].mxu0 %v17
  %v171 = vpop.f32.mrb[0].mxu0
  %v172 = vadd.f32 %v76, %v171
  %v173 = vpop.f32.mrb[0].mxu0
  %174 = vmatprep.mubr.f32.mxu0 %v21
  %175 = vmatmul.mubr.f32.gmra.mrb[0].mxu0 %v20
  %v176 = vpop.f32.mrb[0].mxu0
  %v177 = vadd.f32 %v76, %v176
  %v178 = vpop.f32.mrb[0].mxu0
  %179 = vmatprep.mubr.f32.mxu0 %v24
  %180 = vmatmul.mubr.f32.gmra.mrb[0].mxu0 %v23
  %v181 = vpop.f32.mrb[0].mxu0
  %v182 = vadd.f32 %v76, %v181
  %v183 = vpop.f32.mrb[0].mxu0
  %184 = vmatprep.mubr.f32.mxu0 %v27
  %185 = vmatmul.mubr.f32.gmra.mrb[0].mxu0 %v26
  %v186 = vpop.f32.mrb[0].mxu0
  %v187 = vadd.f32 %v76, %v186
  %v188 = vpop.f32.mrb[0].mxu0
  %189 = vmatprep.mubr.f32.mxu0 %v30
  %190 = vmatmul.mubr.f32.gmra.mrb[0].mxu0 %v29
  %v191 = vpop.f32.mrb[0].mxu0
  %v192 = vadd.f32 %v76, %v191
  %v193 = vpop.f32.mrb[0].mxu0
  %194 = vmatprep.mubr.f32.mxu0 %v33
  %195 = vmatmul.mubr.f32.gmra.mrb[0].mxu0 %v32
  %v196 = vpop.f32.mrb[0].mxu0
  %v197 = vadd.f32 %v76, %v196
  %v198 = vpop.f32.mrb[0].mxu0
  %199 = vdwg.mxu0
  %200 = vmatprep.subr.mxu0 0.0
  %201 = vmatpush1.msra.mxu0 %v67
  %202 = vmatprep.subr.mxu0 0.0
  %203 = vmatpush1.msra.mxu0 %v68
  %204 = vmatprep.subr.mxu0 0.0
  %205 = vmatpush1.msra.mxu0 %v69
  %206 = vmatprep.subr.mxu0 0.0
  %207 = vmatpush1.msra.mxu0 %v70
  %208 = vmatprep.subr.mxu0 0.0
  %209 = vmatpush1.msra.mxu0 0.0
  %210 = vmatprep.subr.mxu0 0.0
  %211 = vmatpush1.msra.mxu0 0.0
  %212 = vmatprep.subr.mxu0 0.0
  %213 = vmatpush1.msra.mxu0 0.0
  %214 = vmatprep.subr.mxu0 0.0
  %215 = vmatpush1.msra.mxu0 0.0
  %216 = vmatprep.subr.mxu0 0.0
  %217 = vmatpush1.msra.mxu0 0.0
  %218 = vmatprep.subr.mxu0 0.0
  %219 = vmatpush1.msra.mxu0 0.0
  %220 = vmatprep.subr.mxu0 0.0
  %221 = vmatpush1.msra.mxu0 0.0
  %222 = vmatprep.subr.mxu0 0.0
  %223 = vmatpush1.msra.mxu0 0.0
  %224 = vmatprep.subr.mxu0 0.0
  %225 = vmatpush1.msra.mxu0 0.0
  %226 = vmatprep.subr.mxu0 0.0
  %227 = vmatpush1.msra.mxu0 0.0
  %228 = vmatprep.subr.mxu0 0.0
  %229 = vmatpush1.msra.mxu0 0.0
  %230 = vmatprep.subr.mxu0 0.0
  %231 = vmatpush1.msra.mxu0 0.0
  %232 = vmatprep.subr.mxu0 0.0
  %233 = vmatpush1.msra.mxu0 0.0
  %234 = vmatprep.subr.mxu0 0.0
  %235 = vmatpush1.msra.mxu0 0.0
  %236 = vmatprep.subr.mxu0 0.0
  %237 = vmatpush1.msra.mxu0 0.0
  %238 = vmatprep.subr.mxu0 0.0
  %239 = vmatpush1.msra.mxu0 0.0
  %240 = vmatprep.subr.mxu0 0.0
  %241 = vmatpush1.msra.mxu0 0.0
  %242 = vmatprep.subr.mxu0 0.0
  %243 = vmatpush1.msra.mxu0 0.0
  %244 = vmatprep.subr.mxu0 0.0
  %245 = vmatpush1.msra.mxu0 0.0
  %246 = vmatprep.subr.mxu0 0.0
  %247 = vmatpush1.msra.mxu0 0.0
  %248 = vmatprep.subr.mxu0 0.0
  %249 = vmatpush1.msra.mxu0 0.0
  %250 = vmatprep.subr.mxu0 0.0
  %251 = vmatpush1.msra.mxu0 0.0
  %252 = vmatprep.subr.mxu0 0.0
  %253 = vmatpush1.msra.mxu0 0.0
  %254 = vmatprep.subr.mxu0 0.0
  %255 = vmatpush1.msra.mxu0 0.0
  %256 = vmatprep.subr.mxu0 0.0
  %257 = vmatpush1.msra.mxu0 0.0
  %258 = vmatprep.subr.mxu0 0.0
  %259 = vmatpush1.msra.mxu0 0.0
  %260 = vmatprep.subr.mxu0 0.0
  %261 = vmatpush1.msra.mxu0 0.0
  %262 = vmatprep.subr.mxu0 0.0
  %263 = vmatpush1.msra.mxu0 0.0
  %264 = vmatprep.mubr.f32.mxu0 0.0
  %265 = vmatmul.mubr.f32.gmra.mrb[0].mxu0 %v80
  %v266 = vpop.f32.mrb[0].mxu0
  %v267 = vadd.f32 %v167, %v266
  %v268 = vpop.f32.mrb[0].mxu0
  %269 = vmatprep.mubr.f32.mxu0 0.0
  %270 = vmatmul.mubr.f32.gmra.mrb[0].mxu0 %v83
  %v271 = vpop.f32.mrb[0].mxu0
  %v272 = vadd.f32 %v172, %v271
  %v273 = vpop.f32.mrb[0].mxu0
  %274 = vmatprep.mubr.f32.mxu0 0.0
  %275 = vmatmul.mubr.f32.gmra.mrb[0].mxu0 %v86
  %v276 = vpop.f32.mrb[0].mxu0
  %v277 = vadd.f32 %v177, %v276
  %v278 = vpop.f32.mrb[0].mxu0
  %279 = vmatprep.mubr.f32.mxu0 0.0
  %280 = vmatmul.mubr.f32.gmra.mrb[0].mxu0 %v89
  %v281 = vpop.f32.mrb[0].mxu0
  %v282 = vadd.f32 %v182, %v281
  %v283 = vpop.f32.mrb[0].mxu0
  %284 = vmatprep.mubr.f32.mxu0 0.0
  %285 = vmatmul.mubr.f32.gmra.mrb[0].mxu0 %v92
  %v286 = vpop.f32.mrb[0].mxu0
  %v287 = vadd.f32 %v187, %v286
  %v288 = vpop.f32.mrb[0].mxu0
  %289 = vmatprep.mubr.f32.mxu0 0.0
  %290 = vmatmul.mubr.f32.gmra.mrb[0].mxu0 %v95
  %v291 = vpop.f32.mrb[0].mxu0
  %v292 = vadd.f32 %v192, %v291
  %v293 = vpop.f32.mrb[0].mxu0
  %294 = vmatprep.mubr.f32.mxu0 0.0
  %295 = vmatmul.mubr.f32.gmra.mrb[0].mxu0 %v98
  %v296 = vpop.f32.mrb[0].mxu0
  %v297 = vadd.f32 %v197, %v296
  %v298 = vpop.f32.mrb[0].mxu0
  %299 = vdwg.mxu0
  %v300 = vmax.f32 %v267, 0.0
  %v301 = vmax.f32 %v272, 0.0
  %v302 = vmax.f32 %v277, 0.0
  %v303 = vmax.f32 %v282, 0.0
  %v304 = vmax.f32 %v287, 0.0
  %v305 = vmax.f32 %v292, 0.0
  %v306 = vmax.f32 %v297, 0.0
  %307 = vst.msk [vmem:[%s3] sm:$0xff] %vm78, %v300
  %308 = vst.msk [vmem:[%s3 + $0x8] sm:$0xff] %vm78, %v301
  %309 = vst.msk [vmem:[%s3 + $0x10] sm:$0xff] %vm78, %v302
  %310 = vst.msk [vmem:[%s3 + $0x18] sm:$0xff] %vm78, %v303
  %311 = vst.msk [vmem:[%s3 + $0x20] sm:$0xff] %vm78, %v304
  %312 = vst.msk [vmem:[%s3 + $0x28] sm:$0xff] %vm78, %v305
  %vm313 = vcmask 254976
  %314 = vst.msk [vmem:[%s3 + $0x30] sm:$0x3] %vm313, %v306
  // Predicated region
  $region14: #{_lambda_.4} parent=0 // pred_check
    _
  $region15: #{_lambda_.4} parent=0 // pred_check_branch
    %316 = sbr.rel (0) target = $region17
  $region16: #{_lambda_.4} parent=0 // pred_region
    _
  $region17: #{_lambda_.4} parent=0 // pred_fallthru
    _
  // Predicated region
  $region18: #{_lambda_.4} parent=0 // pred_check
    _
  $region19: #{_lambda_.4} parent=0 // pred_check_branch
    %318 = sbr.rel (0) target = $region21
  $region20: #{_lambda_.4} parent=0 // pred_region
    _
  $region21: #{_lambda_.4} parent=0 // pred_fallthru
    _

// kernel: _lambda_.3
$region0: #{_lambda_.3}
  #allocation0 [shape = 'u32[]', space=smem, size = 0x4, offset = 0x4, fixed_abs, tag = 'smem constant byte address 0x4 - core index']
  #allocation1 [shape = 'u32[144,128]{1,0:T(1,128)}', space=vmem, size = 0x12000, scoped, tag = 'internal scratch']
  %s0 = inlined_call_operand.vmem [shape: f32[98,36], index: 0, kind: input, shape index: {}]
  %s1 = inlined_call_operand.vmem [shape: f32[36,32], index: 1, kind: input, shape index: {}]
  %s2 = inlined_call_operand.vmem [shape: f32[1,32], index: 2, kind: input, shape index: {}]
  %s3 = inlined_call_operand.vmem [shape: f32[98,32], index: 3, kind: output, shape index: {}]
  %s4 = sld [smem:[#allocation0]]
  $region22: #{_lambda_.3} parent=0
    _
  %s6 = ssub.s32 1, %s4
  %s7 = scalar_select 0, %s6, %s4
  // Predicated region
  $region2: #{_lambda_.3} parent=0 // pred_check
    _
  $region3: #{_lambda_.3} parent=0 // pred_check_branch
    %9 = sbr.rel (0) target = $region5
  $region4: #{_lambda_.3} parent=0 // pred_region
    _
  $region5: #{_lambda_.3} parent=0 // pred_fallthru
    _
  // Predicated region
  $region6: #{_lambda_.3} parent=0 // pred_check
    _
  $region7: #{_lambda_.3} parent=0 // pred_check_branch
    %11 = sbr.rel (0) target = $region9
  $region8: #{_lambda_.3} parent=0 // pred_region
    _
  $region9: #{_lambda_.3} parent=0 // pred_fallthru
    _
  // Predicated region
  $region10: #{_lambda_.3} parent=0 // pred_check
    _
  $region11: #{_lambda_.3} parent=0 // pred_check_branch
    %13 = sbr.rel (0) target = $region13
  $region12: #{_lambda_.3} parent=0 // pred_region
    _
  $region13: #{_lambda_.3} parent=0 // pred_fallthru
    _
  %v14 = vld [vmem:[%s0] sm:$0xff]
  %v15 = vld [vmem:[%s0 + $0x8] sm:$0xff]
  %v16 = vld [vmem:[%s0 + $0x10] sm:$0xff]
  %v17 = vld [vmem:[%s0 + $0x18] sm:$0xff]
  %v18 = vld [vmem:[%s0 + $0x20] sm:$0xff]
  %v19 = vld [vmem:[%s0 + $0x28] sm:$0xff]
  %v20 = vld [vmem:[%s0 + $0x30] sm:$0xff]
  %v21 = vld [vmem:[%s0 + $0x38] sm:$0xff]
  %v22 = vld [vmem:[%s0 + $0x40] sm:$0xff]
  %v23 = vld [vmem:[%s0 + $0x48] sm:$0xff]
  %v24 = vld [vmem:[%s0 + $0x50] sm:$0xff]
  %v25 = vld [vmem:[%s0 + $0x58] sm:$0xff]
  %v26 = vld [vmem:[%s0 + $0x60] sm:$0x3]
  %v27 = vld [vmem:[%s1] sm:$0xff]
  %v28 = vld [vmem:[%s1 + $0x8] sm:$0xff]
  %v29 = vld [vmem:[%s1 + $0x10] sm:$0xff]
  %v30 = vld [vmem:[%s1 + $0x18] sm:$0xff]
  %v31 = vld [vmem:[%s1 + $0x20] sm:$0xf]
  %v32 = vld [vmem:[%s2] sm:$0x1]
  %v34 = vlaneseq
  %v35 = vshrl.u32 %v34, 7
  %v36 = vsub.s32 0, %v35
  %v37 = vrot.slane %v32, %v36
  %vm39 = vcmask 293888
  %v41 = vsel %vm39, %v14, 0
  %v44 = vsel %vm39, %v15, 0
  %v47 = vsel %vm39, %v16, 0
  %v50 = vsel %vm39, %v17, 0
  %v53 = vsel %vm39, %v18, 0
  %v56 = vsel %vm39, %v19, 0
  %v59 = vsel %vm39, %v20, 0
  %v62 = vsel %vm39, %v21, 0
  %v65 = vsel %vm39, %v22, 0
  %v68 = vsel %vm39, %v23, 0
  %v71 = vsel %vm39, %v24, 0
  %v74 = vsel %vm39, %v25, 0
  %v77 = vsel %vm39, %v26, 0
  %vm79 = vcmask 1043456
  %v81 = vsel %vm79, %v31, 0
  %83 = vmatprep.subr.mxu0 0.0
  %84 = vmatpush1.msra.mxu0 %v27
  %85 = vmatprep.subr.mxu0 0.0
  %86 = vmatpush1.msra.mxu0 %v28
  %87 = vmatprep.subr.mxu0 0.0
  %88 = vmatpush1.msra.mxu0 %v29
  %89 = vmatprep.subr.mxu0 0.0
  %90 = vmatpush1.msra.mxu0 %v30
  %91 = vmatprep.subr.mxu0 0.0
  %92 = vmatpush1.msra.mxu0 %v81
  %93 = vmatprep.subr.mxu0 0.0
  %94 = vmatpush1.msra.mxu0 0.0
  %95 = vmatprep.subr.mxu0 0.0
  %96 = vmatpush1.msra.mxu0 0.0
  %97 = vmatprep.subr.mxu0 0.0
  %98 = vmatpush1.msra.mxu0 0.0
  %99 = vmatprep.subr.mxu0 0.0
  %100 = vmatpush1.msra.mxu0 0.0
  %101 = vmatprep.subr.mxu0 0.0
  %102 = vmatpush1.msra.mxu0 0.0
  %103 = vmatprep.subr.mxu0 0.0
  %104 = vmatpush1.msra.mxu0 0.0
  %105 = vmatprep.subr.mxu0 0.0
  %106 = vmatpush1.msra.mxu0 0.0
  %107 = vmatprep.subr.mxu0 0.0
  %108 = vmatpush1.msra.mxu0 0.0
  %109 = vmatprep.subr.mxu0 0.0
  %110 = vmatpush1.msra.mxu0 0.0
  %111 = vmatprep.subr.mxu0 0.0
  %112 = vmatpush1.msra.mxu0 0.0
  %113 = vmatprep.subr.mxu0 0.0
  %114 = vmatpush1.msra.mxu0 0.0
  %115 = vmatprep.subr.mxu0 0.0
  %116 = vmatpush1.msra.mxu0 0.0
  %117 = vmatprep.subr.mxu0 0.0
  %118 = vmatpush1.msra.mxu0 0.0
  %119 = vmatprep.subr.mxu0 0.0
  %120 = vmatpush1.msra.mxu0 0.0
  %121 = vmatprep.subr.mxu0 0.0
  %122 = vmatpush1.msra.mxu0 0.0
  %123 = vmatprep.subr.mxu0 0.0
  %124 = vmatpush1.msra.mxu0 0.0
  %125 = vmatprep.subr.mxu0 0.0
  %126 = vmatpush1.msra.mxu0 0.0
  %127 = vmatprep.subr.mxu0 0.0
  %128 = vmatpush1.msra.mxu0 0.0
  %129 = vmatprep.subr.mxu0 0.0
  %130 = vmatpush1.msra.mxu0 0.0
  %131 = vmatprep.subr.mxu0 0.0
  %132 = vmatpush1.msra.mxu0 0.0
  %133 = vmatprep.subr.mxu0 0.0
  %134 = vmatpush1.msra.mxu0 0.0
  %135 = vmatprep.subr.mxu0 0.0
  %136 = vmatpush1.msra.mxu0 0.0
  %137 = vmatprep.subr.mxu0 0.0
  %138 = vmatpush1.msra.mxu0 0.0
  %139 = vmatprep.subr.mxu0 0.0
  %140 = vmatpush1.msra.mxu0 0.0
  %141 = vmatprep.subr.mxu0 0.0
  %142 = vmatpush1.msra.mxu0 0.0
  %143 = vmatprep.subr.mxu0 0.0
  %144 = vmatpush1.msra.mxu0 0.0
  %145 = vmatprep.subr.mxu0 0.0
  %146 = vmatpush1.msra.mxu0 0.0
  %147 = vmatprep.mubr.f32.mxu0 0.0
  %148 = vmatmul.mubr.f32.gmra.mrb[0].mxu0 %v41
  %v149 = vpop.f32.mrb[0].mxu0
  %v150 = vadd.f32 %v37, %v149
  %v151 = vpop.f32.mrb[0].mxu0
  %152 = vmatprep.mubr.f32.mxu0 0.0
  %153 = vmatmul.mubr.f32.gmra.mrb[0].mxu0 %v44
  %v154 = vpop.f32.mrb[0].mxu0
  %v155 = vadd.f32 %v37, %v154
  %v156 = vpop.f32.mrb[0].mxu0
  %157 = vmatprep.mubr.f32.mxu0 0.0
  %158 = vmatmul.mubr.f32.gmra.mrb[0].mxu0 %v47
  %v159 = vpop.f32.mrb[0].mxu0
  %v160 = vadd.f32 %v37, %v159
  %v161 = vpop.f32.mrb[0].mxu0
  %162 = vmatprep.mubr.f32.mxu0 0.0
  %163 = vmatmul.mubr.f32.gmra.mrb[0].mxu0 %v50
  %v164 = vpop.f32.mrb[0].mxu0
  %v165 = vadd.f32 %v37, %v164
  %v166 = vpop.f32.mrb[0].mxu0
  %167 = vmatprep.mubr.f32.mxu0 0.0
  %168 = vmatmul.mubr.f32.gmra.mrb[0].mxu0 %v53
  %v169 = vpop.f32.mrb[0].mxu0
  %v170 = vadd.f32 %v37, %v169
  %v171 = vpop.f32.mrb[0].mxu0
  %172 = vmatprep.mubr.f32.mxu0 0.0
  %173 = vmatmul.mubr.f32.gmra.mrb[0].mxu0 %v56
  %v174 = vpop.f32.mrb[0].mxu0
  %v175 = vadd.f32 %v37, %v174
  %v176 = vpop.f32.mrb[0].mxu0
  %177 = vmatprep.mubr.f32.mxu0 0.0
  %178 = vmatmul.mubr.f32.gmra.mrb[0].mxu0 %v59
  %v179 = vpop.f32.mrb[0].mxu0
  %v180 = vadd.f32 %v37, %v179
  %v181 = vpop.f32.mrb[0].mxu0
  %182 = vmatprep.mubr.f32.mxu0 0.0
  %183 = vmatmul.mubr.f32.gmra.mrb[0].mxu0 %v62
  %v184 = vpop.f32.mrb[0].mxu0
  %v185 = vadd.f32 %v37, %v184
  %v186 = vpop.f32.mrb[0].mxu0
  %187 = vmatprep.mubr.f32.mxu0 0.0
  %188 = vmatmul.mubr.f32.gmra.mrb[0].mxu0 %v65
  %v189 = vpop.f32.mrb[0].mxu0
  %v190 = vadd.f32 %v37, %v189
  %v191 = vpop.f32.mrb[0].mxu0
  %192 = vmatprep.mubr.f32.mxu0 0.0
  %193 = vmatmul.mubr.f32.gmra.mrb[0].mxu0 %v68
  %v194 = vpop.f32.mrb[0].mxu0
  %v195 = vadd.f32 %v37, %v194
  %v196 = vpop.f32.mrb[0].mxu0
  %197 = vmatprep.mubr.f32.mxu0 0.0
  %198 = vmatmul.mubr.f32.gmra.mrb[0].mxu0 %v71
  %v199 = vpop.f32.mrb[0].mxu0
  %v200 = vadd.f32 %v37, %v199
  %v201 = vpop.f32.mrb[0].mxu0
  %202 = vmatprep.mubr.f32.mxu0 0.0
  %203 = vmatmul.mubr.f32.gmra.mrb[0].mxu0 %v74
  %v204 = vpop.f32.mrb[0].mxu0
  %v205 = vadd.f32 %v37, %v204
  %v206 = vpop.f32.mrb[0].mxu0
  %207 = vmatprep.mubr.f32.mxu0 0.0
  %208 = vmatmul.mubr.f32.gmra.mrb[0].mxu0 %v77
  %v209 = vpop.f32.mrb[0].mxu0
  %v210 = vadd.f32 %v37, %v209
  %v211 = vpop.f32.mrb[0].mxu0
  %212 = vdwg.mxu0
  %v213 = vmax.f32 %v150, 0.0
  %v214 = vmax.f32 %v155, 0.0
  %v215 = vmax.f32 %v160, 0.0
  %v216 = vmax.f32 %v165, 0.0
  %v217 = vmax.f32 %v170, 0.0
  %v218 = vmax.f32 %v175, 0.0
  %v219 = vmax.f32 %v180, 0.0
  %v220 = vmax.f32 %v185, 0.0
  %v221 = vmax.f32 %v190, 0.0
  %v222 = vmax.f32 %v195, 0.0
  %v223 = vmax.f32 %v200, 0.0
  %v224 = vmax.f32 %v205, 0.0
  %v225 = vmax.f32 %v210, 0.0
  %vm226 = vcmask 261120
  %227 = vst.msk [vmem:[%s3] sm:$0xff] %vm226, %v213
  %228 = vst.msk [vmem:[%s3 + $0x8] sm:$0xff] %vm226, %v214
  %229 = vst.msk [vmem:[%s3 + $0x10] sm:$0xff] %vm226, %v215
  %230 = vst.msk [vmem:[%s3 + $0x18] sm:$0xff] %vm226, %v216
  %231 = vst.msk [vmem:[%s3 + $0x20] sm:$0xff] %vm226, %v217
  %232 = vst.msk [vmem:[%s3 + $0x28] sm:$0xff] %vm226, %v218
  %233 = vst.msk [vmem:[%s3 + $0x30] sm:$0xff] %vm226, %v219
  %234 = vst.msk [vmem:[%s3 + $0x38] sm:$0xff] %vm226, %v220
  %235 = vst.msk [vmem:[%s3 + $0x40] sm:$0xff] %vm226, %v221
  %236 = vst.msk [vmem:[%s3 + $0x48] sm:$0xff] %vm226, %v222
  %237 = vst.msk [vmem:[%s3 + $0x50] sm:$0xff] %vm226, %v223
  %238 = vst.msk [vmem:[%s3 + $0x58] sm:$0xff] %vm226, %v224
  %vm239 = vcmask 254976
  %240 = vst.msk [vmem:[%s3 + $0x60] sm:$0x3] %vm239, %v225
  // Predicated region
  $region14: #{_lambda_.3} parent=0 // pred_check
    _
  $region15: #{_lambda_.3} parent=0 // pred_check_branch
    %242 = sbr.rel (0) target = $region17
  $region16: #{_lambda_.3} parent=0 // pred_region
    _
  $region17: #{_lambda_.3} parent=0 // pred_fallthru
    _
  // Predicated region
  $region18: #{_lambda_.3} parent=0 // pred_check
    _
  $region19: #{_lambda_.3} parent=0 // pred_check_branch
    %244 = sbr.rel (0) target = $region21
  $region20: #{_lambda_.3} parent=0 // pred_region
    _
  $region21: #{_lambda_.3} parent=0 // pred_fallthru
    _

// kernel: _lambda_.5
$region0: #{_lambda_.5}
  #allocation0 [shape = 'u32[]', space=smem, size = 0x4, offset = 0x4, fixed_abs, tag = 'smem constant byte address 0x4 - core index']
  #allocation1 [shape = 'u32[144,128]{1,0:T(1,128)}', space=vmem, size = 0x12000, scoped, tag = 'internal scratch']
  %s0 = inlined_call_operand.vmem [shape: f32[2,800], index: 0, kind: input, shape index: {}]
  %s1 = inlined_call_operand.vmem [shape: f32[800,32], index: 1, kind: input, shape index: {}]
  %s2 = inlined_call_operand.vmem [shape: f32[1,32], index: 2, kind: input, shape index: {}]
  %s3 = inlined_call_operand.vmem [shape: f32[1,32], index: 3, kind: input, shape index: {}]
  %s4 = inlined_call_operand.vmem [shape: f32[1,32], index: 4, kind: input, shape index: {}]
  %s5 = inlined_call_operand.vmem [shape: f32[32,32], index: 5, kind: input, shape index: {}]
  %s6 = inlined_call_operand.vmem [shape: f32[1,32], index: 6, kind: input, shape index: {}]
  %s7 = inlined_call_operand.vmem [shape: f32[32,32], index: 7, kind: input, shape index: {}]
  %s8 = inlined_call_operand.vmem [shape: f32[1,32], index: 8, kind: input, shape index: {}]
  %s9 = inlined_call_operand.vmem [shape: f32[32,256], index: 9, kind: input, shape index: {}]
  %s10 = inlined_call_operand.vmem [shape: f32[1,256], index: 10, kind: input, shape index: {}]
  %s11 = inlined_call_operand.hbm [shape: f32[2,128], index: 11, kind: output, shape index: {0}]
  %s12 = inlined_call_operand.hbm [shape: f32[2,128], index: 12, kind: output, shape index: {1}]
  %13 = xla_tuple %s11, %s12
  %s14 = sld [smem:[#allocation0]]
  $region62: #{_lambda_.5} parent=0
    _
  %s16 = ssub.s32 1, %s14
  %s17 = scalar_select 0, %s16, %s14
  $region1: #{_lambda_.5} parent=0
    #allocation2 [shape = 'u8[1024]{0}', space=vmem, size = 0x400, scoped, tag = 'output window, operand 0, single buffered']
    #allocation3 [shape = 's32[1]{0}', space=sflag, size = 0x4, scoped, tag = 'scoped memory for _lambda_.5']
    #allocation4 [shape = 'u8[1024]{0}', space=vmem, size = 0x400, scoped, tag = 'output window, operand 1, single buffered']
    #allocation5 [shape = 's32[1]{0}', space=sflag, size = 0x4, scoped, tag = 'scoped memory for _lambda_.5']
    %18 = vsyncpa [#allocation3], 0
    %19 = vsyncpa [#allocation5], 0
    // Predicated region
    $region2: #{_lambda_.5} parent=1 // pred_check
      _
    $region3: #{_lambda_.5} parent=1 // pred_check_branch
      %21 = sbr.rel (0) target = $region5
    $region4: #{_lambda_.5} parent=1 // pred_region
      _
    $region5: #{_lambda_.5} parent=1 // pred_fallthru
      _
    // Predicated region
    $region6: #{_lambda_.5} parent=1 // pred_check
      _
    $region7: #{_lambda_.5} parent=1 // pred_check_branch
      %23 = sbr.rel (0) target = $region9
    $region8: #{_lambda_.5} parent=1 // pred_region
      _
    $region9: #{_lambda_.5} parent=1 // pred_fallthru
      _
    // Predicated region
    $region10: #{_lambda_.5} parent=1 // pred_check
      _
    $region11: #{_lambda_.5} parent=1 // pred_check_branch
      %25 = sbr.rel (0) target = $region13
    $region12: #{_lambda_.5} parent=1 // pred_region
      _
    $region13: #{_lambda_.5} parent=1 // pred_fallthru
      _
    // Predicated region
    $region14: #{_lambda_.5} parent=1 // pred_check
      _
    $region15: #{_lambda_.5} parent=1 // pred_check_branch
      %27 = sbr.rel (0) target = $region17
    $region16: #{_lambda_.5} parent=1 // pred_region
      _
    $region17: #{_lambda_.5} parent=1 // pred_fallthru
      _
    // Predicated region
    $region18: #{_lambda_.5} parent=1 // pred_check
      _
    $region19: #{_lambda_.5} parent=1 // pred_check_branch
      %29 = sbr.rel (0) target = $region21
    $region20: #{_lambda_.5} parent=1 // pred_region
      _
    $region21: #{_lambda_.5} parent=1 // pred_fallthru
      _
    // Predicated region
    $region22: #{_lambda_.5} parent=1 // pred_check
      _
    $region23: #{_lambda_.5} parent=1 // pred_check_branch
      %31 = sbr.rel (0) target = $region25
    $region24: #{_lambda_.5} parent=1 // pred_region
      _
    $region25: #{_lambda_.5} parent=1 // pred_fallthru
      _
    // Predicated region
    $region26: #{_lambda_.5} parent=1 // pred_check
      _
    $region27: #{_lambda_.5} parent=1 // pred_check_branch
      %33 = sbr.rel (0) target = $region29
    $region28: #{_lambda_.5} parent=1 // pred_region
      _
    $region29: #{_lambda_.5} parent=1 // pred_fallthru
      _
    // Predicated region
    $region30: #{_lambda_.5} parent=1 // pred_check
      _
    $region31: #{_lambda_.5} parent=1 // pred_check_branch
      %35 = sbr.rel (0) target = $region33
    $region32: #{_lambda_.5} parent=1 // pred_region
      _
    $region33: #{_lambda_.5} parent=1 // pred_fallthru
      _
    // Predicated region
    $region34: #{_lambda_.5} parent=1 // pred_check
      _
    $region35: #{_lambda_.5} parent=1 // pred_check_branch
      %37 = sbr.rel (0) target = $region37
    $region36: #{_lambda_.5} parent=1 // pred_region
      _
    $region37: #{_lambda_.5} parent=1 // pred_fallthru
      _
    // Predicated region
    $region38: #{_lambda_.5} parent=1 // pred_check
      _
    $region39: #{_lambda_.5} parent=1 // pred_check_branch
      %39 = sbr.rel (0) target = $region41
    $region40: #{_lambda_.5} parent=1 // pred_region
      _
    $region41: #{_lambda_.5} parent=1 // pred_fallthru
      _
    // Predicated region
    $region42: #{_lambda_.5} parent=1 // pred_check
      _
    $region43: #{_lambda_.5} parent=1 // pred_check_branch
      %41 = sbr.rel (0) target = $region45
    $region44: #{_lambda_.5} parent=1 // pred_region
      _
    $region45: #{_lambda_.5} parent=1 // pred_fallthru
      _
    %v42 = vld [vmem:[%s0] sm:$0xff]
    %v43 = vld [vmem:[%s0 + $0x8] sm:$0x3f]
    %v44 = vld [vmem:[%s1] sm:$0xff]
    %v45 = vld [vmem:[%s1 + $0x8] sm:$0xff]
    %v46 = vld [vmem:[%s1 + $0x10] sm:$0xff]
    %v47 = vld [vmem:[%s1 + $0x18] sm:$0xff]
    %v48 = vld [vmem:[%s1 + $0x20] sm:$0xff]
    %v49 = vld [vmem:[%s1 + $0x28] sm:$0xff]
    %v50 = vld [vmem:[%s1 + $0x30] sm:$0xff]
    %v51 = vld [vmem:[%s1 + $0x38] sm:$0xff]
    %v52 = vld [vmem:[%s1 + $0x40] sm:$0xff]
    %v53 = vld [vmem:[%s1 + $0x48] sm:$0xff]
    %v54 = vld [vmem:[%s1 + $0x50] sm:$0xff]
    %v55 = vld [vmem:[%s1 + $0x58] sm:$0xff]
    %v56 = vld [vmem:[%s1 + $0x60] sm:$0xff]
    %v57 = vld [vmem:[%s1 + $0x68] sm:$0xff]
    %v58 = vld [vmem:[%s1 + $0x70] sm:$0xff]
    %v59 = vld [vmem:[%s1 + $0x78] sm:$0xff]
    %v60 = vld [vmem:[%s1 + $0x80] sm:$0xff]
    %v61 = vld [vmem:[%s1 + $0x88] sm:$0xff]
    %v62 = vld [vmem:[%s1 + $0x90] sm:$0xff]
    %v63 = vld [vmem:[%s1 + $0x98] sm:$0xff]
    %v64 = vld [vmem:[%s1 + $0xa0] sm:$0xff]
    %v65 = vld [vmem:[%s1 + $0xa8] sm:$0xff]
    %v66 = vld [vmem:[%s1 + $0xb0] sm:$0xff]
    %v67 = vld [vmem:[%s1 + $0xb8] sm:$0xff]
    %v68 = vld [vmem:[%s1 + $0xc0] sm:$0xff]
    %v69 = vld [vmem:[%s1 + $0xc8] sm:$0xff]
    %v70 = vld [vmem:[%s1 + $0xd0] sm:$0xff]
    %v71 = vld [vmem:[%s1 + $0xd8] sm:$0xff]
    %v72 = vld [vmem:[%s1 + $0xe0] sm:$0xff]
    %v73 = vld [vmem:[%s1 + $0xe8] sm:$0xff]
    %v74 = vld [vmem:[%s1 + $0xf0] sm:$0xff]
    %v75 = vld [vmem:[%s1 + $0xf8] sm:$0xff]
    %v76 = vld [vmem:[%s1 + $0x100] sm:$0xff]
    %v77 = vld [vmem:[%s1 + $0x108] sm:$0xff]
    %v78 = vld [vmem:[%s1 + $0x110] sm:$0xff]
    %v79 = vld [vmem:[%s1 + $0x118] sm:$0xff]
    %v80 = vld [vmem:[%s1 + $0x120] sm:$0xff]
    %v81 = vld [vmem:[%s1 + $0x128] sm:$0xff]
    %v82 = vld [vmem:[%s1 + $0x130] sm:$0xff]
    %v83 = vld [vmem:[%s1 + $0x138] sm:$0xff]
    %v84 = vld [vmem:[%s1 + $0x140] sm:$0xff]
    %v85 = vld [vmem:[%s1 + $0x148] sm:$0xff]
    %v86 = vld [vmem:[%s1 + $0x150] sm:$0xff]
    %v87 = vld [vmem:[%s1 + $0x158] sm:$0xff]
    %v88 = vld [vmem:[%s1 + $0x160] sm:$0xff]
    %v89 = vld [vmem:[%s1 + $0x168] sm:$0xff]
    %v90 = vld [vmem:[%s1 + $0x170] sm:$0xff]
    %v91 = vld [vmem:[%s1 + $0x178] sm:$0xff]
    %v92 = vld [vmem:[%s1 + $0x180] sm:$0xff]
    %v93 = vld [vmem:[%s1 + $0x188] sm:$0xff]
    %v94 = vld [vmem:[%s1 + $0x190] sm:$0xff]
    %v95 = vld [vmem:[%s1 + $0x198] sm:$0xff]
    %v96 = vld [vmem:[%s1 + $0x1a0] sm:$0xff]
    %v97 = vld [vmem:[%s1 + $0x1a8] sm:$0xff]
    %v98 = vld [vmem:[%s1 + $0x1b0] sm:$0xff]
    %v99 = vld [vmem:[%s1 + $0x1b8] sm:$0xff]
    %v100 = vld [vmem:[%s1 + $0x1c0] sm:$0xff]
    %v101 = vld [vmem:[%s1 + $0x1c8] sm:$0xff]
    %v102 = vld [vmem:[%s1 + $0x1d0] sm:$0xff]
    %v103 = vld [vmem:[%s1 + $0x1d8] sm:$0xff]
    %v104 = vld [vmem:[%s1 + $0x1e0] sm:$0xff]
    %v105 = vld [vmem:[%s1 + $0x1e8] sm:$0xff]
    %v106 = vld [vmem:[%s1 + $0x1f0] sm:$0xff]
    %v107 = vld [vmem:[%s1 + $0x1f8] sm:$0xff]
    %v108 = vld [vmem:[%s1 + $0x200] sm:$0xff]
    %v109 = vld [vmem:[%s1 + $0x208] sm:$0xff]
    %v110 = vld [vmem:[%s1 + $0x210] sm:$0xff]
    %v111 = vld [vmem:[%s1 + $0x218] sm:$0xff]
    %v112 = vld [vmem:[%s1 + $0x220] sm:$0xff]
    %v113 = vld [vmem:[%s1 + $0x228] sm:$0xff]
    %v114 = vld [vmem:[%s1 + $0x230] sm:$0xff]
    %v115 = vld [vmem:[%s1 + $0x238] sm:$0xff]
    %v116 = vld [vmem:[%s1 + $0x240] sm:$0xff]
    %v117 = vld [vmem:[%s1 + $0x248] sm:$0xff]
    %v118 = vld [vmem:[%s1 + $0x250] sm:$0xff]
    %v119 = vld [vmem:[%s1 + $0x258] sm:$0xff]
    %v120 = vld [vmem:[%s1 + $0x260] sm:$0xff]
    %v121 = vld [vmem:[%s1 + $0x268] sm:$0xff]
    %v122 = vld [vmem:[%s1 + $0x270] sm:$0xff]
    %v123 = vld [vmem:[%s1 + $0x278] sm:$0xff]
    %v124 = vld [vmem:[%s1 + $0x280] sm:$0xff]
    %v125 = vld [vmem:[%s1 + $0x288] sm:$0xff]
    %v126 = vld [vmem:[%s1 + $0x290] sm:$0xff]
    %v127 = vld [vmem:[%s1 + $0x298] sm:$0xff]
    %v128 = vld [vmem:[%s1 + $0x2a0] sm:$0xff]
    %v129 = vld [vmem:[%s1 + $0x2a8] sm:$0xff]
    %v130 = vld [vmem:[%s1 + $0x2b0] sm:$0xff]
    %v131 = vld [vmem:[%s1 + $0x2b8] sm:$0xff]
    %v132 = vld [vmem:[%s1 + $0x2c0] sm:$0xff]
    %v133 = vld [vmem:[%s1 + $0x2c8] sm:$0xff]
    %v134 = vld [vmem:[%s1 + $0x2d0] sm:$0xff]
    %v135 = vld [vmem:[%s1 + $0x2d8] sm:$0xff]
    %v136 = vld [vmem:[%s1 + $0x2e0] sm:$0xff]
    %v137 = vld [vmem:[%s1 + $0x2e8] sm:$0xff]
    %v138 = vld [vmem:[%s1 + $0x2f0] sm:$0xff]
    %v139 = vld [vmem:[%s1 + $0x2f8] sm:$0xff]
    %v140 = vld [vmem:[%s1 + $0x300] sm:$0xff]
    %v141 = vld [vmem:[%s1 + $0x308] sm:$0xff]
    %v142 = vld [vmem:[%s1 + $0x310] sm:$0xff]
    %v143 = vld [vmem:[%s1 + $0x318] sm:$0xff]
    %v144 = vld [vmem:[%s2] sm:$0x1]
    %v146 = vlaneseq
    %v147 = vshrl.u32 %v146, 7
    %v148 = vsub.s32 0, %v147
    %v149 = vrot.slane %v144, %v148
    %v153 = vcombine.high %v42, %v42
    %v155 = vunpack.c.l.s4 1983009808
    %v156 = vunpack.c.0.s8 %v155
    %v157 = vlaneseq
    %v158 = vshrl.u32 %v157, 7
    %v159 = vsub.s32 %v156, %v158
    %v160 = vrot.slane %v42, %v159
    %v162 = vunpack.c.l.s4 1983009808
    %v163 = vunpack.c.0.s8 %v162
    %v164 = vlaneseq
    %v165 = vshrl.u32 %v164, 7
    %v166 = vsub.s32 %v163, %v165
    %v167 = vrot.slane %v153, %v166
    %v168 = vcombine.high %v160, %v160
    %v169 = vcombine.high %v167, %v167
    %v170 = vcombine.high %v43, %v43
    %v172 = vunpack.c.l.s4 1983009808
    %v173 = vunpack.c.0.s8 %v172
    %v174 = vlaneseq
    %v175 = vshrl.u32 %v174, 7
    %v176 = vsub.s32 %v173, %v175
    %v177 = vrot.slane %v43, %v176
    %v179 = vunpack.c.l.s4 1983009808
    %v180 = vunpack.c.0.s8 %v179
    %v181 = vlaneseq
    %v182 = vshrl.u32 %v181, 7
    %v183 = vsub.s32 %v180, %v182
    %v184 = vrot.slane %v170, %v183
    %v185 = vcombine.high %v177, %v177
    %vm192 = vcmask 261120
    %v193 = vsel %vm192, %v184, 0
    %195 = vmatprep.subr.mxu0 0.0
    %196 = vmatpush1.msra.mxu0 %v44
    %197 = vmatprep.subr.mxu0 0.0
    %198 = vmatpush1.msra.mxu0 %v45
    %199 = vmatprep.subr.mxu0 0.0
    %200 = vmatpush1.msra.mxu0 %v46
    %201 = vmatprep.subr.mxu0 0.0
    %202 = vmatpush1.msra.mxu0 %v47
    %203 = vmatprep.subr.mxu0 0.0
    %204 = vmatpush1.msra.mxu0 %v48
    %205 = vmatprep.subr.mxu0 0.0
    %206 = vmatpush1.msra.mxu0 %v49
    %207 = vmatprep.subr.mxu0 0.0
    %208 = vmatpush1.msra.mxu0 %v50
    %209 = vmatprep.subr.mxu0 0.0
    %210 = vmatpush1.msra.mxu0 %v51
    %211 = vmatprep.subr.mxu0 0.0
    %212 = vmatpush1.msra.mxu0 %v52
    %213 = vmatprep.subr.mxu0 0.0
    %214 = vmatpush1.msra.mxu0 %v53
    %215 = vmatprep.subr.mxu0 0.0
    %216 = vmatpush1.msra.mxu0 %v54
    %217 = vmatprep.subr.mxu0 0.0
    %218 = vmatpush1.msra.mxu0 %v55
    %219 = vmatprep.subr.mxu0 0.0
    %220 = vmatpush1.msra.mxu0 %v56
    %221 = vmatprep.subr.mxu0 0.0
    %222 = vmatpush1.msra.mxu0 %v57
    %223 = vmatprep.subr.mxu0 0.0
    %224 = vmatpush1.msra.mxu0 %v58
    %225 = vmatprep.subr.mxu0 0.0
    %226 = vmatpush1.msra.mxu0 %v59
    %227 = vmatprep.subr.mxu0 0.0
    %228 = vmatpush1.msra.mxu0 %v60
    %229 = vmatprep.subr.mxu0 0.0
    %230 = vmatpush1.msra.mxu0 %v61
    %231 = vmatprep.subr.mxu0 0.0
    %232 = vmatpush1.msra.mxu0 %v62
    %233 = vmatprep.subr.mxu0 0.0
    %234 = vmatpush1.msra.mxu0 %v63
    %235 = vmatprep.subr.mxu0 0.0
    %236 = vmatpush1.msra.mxu0 %v64
    %237 = vmatprep.subr.mxu0 0.0
    %238 = vmatpush1.msra.mxu0 %v65
    %239 = vmatprep.subr.mxu0 0.0
    %240 = vmatpush1.msra.mxu0 %v66
    %241 = vmatprep.subr.mxu0 0.0
    %242 = vmatpush1.msra.mxu0 %v67
    %243 = vmatprep.subr.mxu0 0.0
    %244 = vmatpush1.msra.mxu0 %v68
    %245 = vmatprep.subr.mxu0 0.0
    %246 = vmatpush1.msra.mxu0 %v69
    %247 = vmatprep.subr.mxu0 0.0
    %248 = vmatpush1.msra.mxu0 %v70
    %249 = vmatprep.subr.mxu0 0.0
    %250 = vmatpush1.msra.mxu0 %v71
    %251 = vmatprep.subr.mxu0 0.0
    %252 = vmatpush1.msra.mxu0 %v72
    %253 = vmatprep.subr.mxu0 0.0
    %254 = vmatpush1.msra.mxu0 %v73
    %255 = vmatprep.subr.mxu0 0.0
    %256 = vmatpush1.msra.mxu0 %v74
    %257 = vmatprep.subr.mxu0 0.0
    %258 = vmatpush1.msra.mxu0 %v75
    %259 = vmatprep.mubr.f32.mxu0 %v168
    %260 = vmatmul.mubr.f32.gmra.mrb[0].mxu0 %v160
    %v261 = vpop.f32.mrb[0].mxu0
    %v262 = vadd.f32 %v149, %v261
    %v263 = vpop.f32.mrb[0].mxu0
    %264 = vdwg.mxu0
    %265 = vmatprep.subr.mxu0 0.0
    %266 = vmatpush1.msra.mxu0 %v76
    %267 = vmatprep.subr.mxu0 0.0
    %268 = vmatpush1.msra.mxu0 %v77
    %269 = vmatprep.subr.mxu0 0.0
    %270 = vmatpush1.msra.mxu0 %v78
    %271 = vmatprep.subr.mxu0 0.0
    %272 = vmatpush1.msra.mxu0 %v79
    %273 = vmatprep.subr.mxu0 0.0
    %274 = vmatpush1.msra.mxu0 %v80
    %275 = vmatprep.subr.mxu0 0.0
    %276 = vmatpush1.msra.mxu0 %v81
    %277 = vmatprep.subr.mxu0 0.0
    %278 = vmatpush1.msra.mxu0 %v82
    %279 = vmatprep.subr.mxu0 0.0
    %280 = vmatpush1.msra.mxu0 %v83
    %281 = vmatprep.subr.mxu0 0.0
    %282 = vmatpush1.msra.mxu0 %v84
    %283 = vmatprep.subr.mxu0 0.0
    %284 = vmatpush1.msra.mxu0 %v85
    %285 = vmatprep.subr.mxu0 0.0
    %286 = vmatpush1.msra.mxu0 %v86
    %287 = vmatprep.subr.mxu0 0.0
    %288 = vmatpush1.msra.mxu0 %v87
    %289 = vmatprep.subr.mxu0 0.0
    %290 = vmatpush1.msra.mxu0 %v88
    %291 = vmatprep.subr.mxu0 0.0
    %292 = vmatpush1.msra.mxu0 %v89
    %293 = vmatprep.subr.mxu0 0.0
    %294 = vmatpush1.msra.mxu0 %v90
    %295 = vmatprep.subr.mxu0 0.0
    %296 = vmatpush1.msra.mxu0 %v91
    %297 = vmatprep.subr.mxu0 0.0
    %298 = vmatpush1.msra.mxu0 %v92
    %299 = vmatprep.subr.mxu0 0.0
    %300 = vmatpush1.msra.mxu0 %v93
    %301 = vmatprep.subr.mxu0 0.0
    %302 = vmatpush1.msra.mxu0 %v94
    %303 = vmatprep.subr.mxu0 0.0
    %304 = vmatpush1.msra.mxu0 %v95
    %305 = vmatprep.subr.mxu0 0.0
    %306 = vmatpush1.msra.mxu0 %v96
    %307 = vmatprep.subr.mxu0 0.0
    %308 = vmatpush1.msra.mxu0 %v97
    %309 = vmatprep.subr.mxu0 0.0
    %310 = vmatpush1.msra.mxu0 %v98
    %311 = vmatprep.subr.mxu0 0.0
    %312 = vmatpush1.msra.mxu0 %v99
    %313 = vmatprep.subr.mxu0 0.0
    %314 = vmatpush1.msra.mxu0 %v100
    %315 = vmatprep.subr.mxu0 0.0
    %316 = vmatpush1.msra.mxu0 %v101
    %317 = vmatprep.subr.mxu0 0.0
    %318 = vmatpush1.msra.mxu0 %v102
    %319 = vmatprep.subr.mxu0 0.0
    %320 = vmatpush1.msra.mxu0 %v103
    %321 = vmatprep.subr.mxu0 0.0
    %322 = vmatpush1.msra.mxu0 %v104
    %323 = vmatprep.subr.mxu0 0.0
    %324 = vmatpush1.msra.mxu0 %v105
    %325 = vmatprep.subr.mxu0 0.0
    %326 = vmatpush1.msra.mxu0 %v106
    %327 = vmatprep.subr.mxu0 0.0
    %328 = vmatpush1.msra.mxu0 %v107
    %329 = vmatprep.mubr.f32.mxu0 %v169
    %330 = vmatmul.mubr.f32.gmra.mrb[0].mxu0 %v167
    %v331 = vpop.f32.mrb[0].mxu0
    %v332 = vadd.f32 %v262, %v331
    %v333 = vpop.f32.mrb[0].mxu0
    %334 = vdwg.mxu0
    %335 = vmatprep.subr.mxu0 0.0
    %336 = vmatpush1.msra.mxu0 %v108
    %337 = vmatprep.subr.mxu0 0.0
    %338 = vmatpush1.msra.mxu0 %v109
    %339 = vmatprep.subr.mxu0 0.0
    %340 = vmatpush1.msra.mxu0 %v110
    %341 = vmatprep.subr.mxu0 0.0
    %342 = vmatpush1.msra.mxu0 %v111
    %343 = vmatprep.subr.mxu0 0.0
    %344 = vmatpush1.msra.mxu0 %v112
    %345 = vmatprep.subr.mxu0 0.0
    %346 = vmatpush1.msra.mxu0 %v113
    %347 = vmatprep.subr.mxu0 0.0
    %348 = vmatpush1.msra.mxu0 %v114
    %349 = vmatprep.subr.mxu0 0.0
    %350 = vmatpush1.msra.mxu0 %v115
    %351 = vmatprep.subr.mxu0 0.0
    %352 = vmatpush1.msra.mxu0 %v116
    %353 = vmatprep.subr.mxu0 0.0
    %354 = vmatpush1.msra.mxu0 %v117
    %355 = vmatprep.subr.mxu0 0.0
    %356 = vmatpush1.msra.mxu0 %v118
    %357 = vmatprep.subr.mxu0 0.0
    %358 = vmatpush1.msra.mxu0 %v119
    %359 = vmatprep.subr.mxu0 0.0
    %360 = vmatpush1.msra.mxu0 %v120
    %361 = vmatprep.subr.mxu0 0.0
    %362 = vmatpush1.msra.mxu0 %v121
    %363 = vmatprep.subr.mxu0 0.0
    %364 = vmatpush1.msra.mxu0 %v122
    %365 = vmatprep.subr.mxu0 0.0
    %366 = vmatpush1.msra.mxu0 %v123
    %367 = vmatprep.subr.mxu0 0.0
    %368 = vmatpush1.msra.mxu0 %v124
    %369 = vmatprep.subr.mxu0 0.0
    %370 = vmatpush1.msra.mxu0 %v125
    %371 = vmatprep.subr.mxu0 0.0
    %372 = vmatpush1.msra.mxu0 %v126
    %373 = vmatprep.subr.mxu0 0.0
    %374 = vmatpush1.msra.mxu0 %v127
    %375 = vmatprep.subr.mxu0 0.0
    %376 = vmatpush1.msra.mxu0 %v128
    %377 = vmatprep.subr.mxu0 0.0
    %378 = vmatpush1.msra.mxu0 %v129
    %379 = vmatprep.subr.mxu0 0.0
    %380 = vmatpush1.msra.mxu0 %v130
    %381 = vmatprep.subr.mxu0 0.0
    %382 = vmatpush1.msra.mxu0 %v131
    %383 = vmatprep.subr.mxu0 0.0
    %384 = vmatpush1.msra.mxu0 %v132
    %385 = vmatprep.subr.mxu0 0.0
    %386 = vmatpush1.msra.mxu0 %v133
    %387 = vmatprep.subr.mxu0 0.0
    %388 = vmatpush1.msra.mxu0 %v134
    %389 = vmatprep.subr.mxu0 0.0
    %390 = vmatpush1.msra.mxu0 %v135
    %391 = vmatprep.subr.mxu0 0.0
    %392 = vmatpush1.msra.mxu0 %v136
    %393 = vmatprep.subr.mxu0 0.0
    %394 = vmatpush1.msra.mxu0 %v137
    %395 = vmatprep.subr.mxu0 0.0
    %396 = vmatpush1.msra.mxu0 %v138
    %397 = vmatprep.subr.mxu0 0.0
    %398 = vmatpush1.msra.mxu0 %v139
    %399 = vmatprep.mubr.f32.mxu0 %v185
    %400 = vmatmul.mubr.f32.gmra.mrb[0].mxu0 %v177
    %v401 = vpop.f32.mrb[0].mxu0
    %v402 = vadd.f32 %v332, %v401
    %v403 = vpop.f32.mrb[0].mxu0
    %404 = vdwg.mxu0
    %405 = vmatprep.subr.mxu0 0.0
    %406 = vmatpush1.msra.mxu0 %v140
    %407 = vmatprep.subr.mxu0 0.0
    %408 = vmatpush1.msra.mxu0 %v141
    %409 = vmatprep.subr.mxu0 0.0
    %410 = vmatpush1.msra.mxu0 %v142
    %411 = vmatprep.subr.mxu0 0.0
    %412 = vmatpush1.msra.mxu0 %v143
    %413 = vmatprep.subr.mxu0 0.0
    %414 = vmatpush1.msra.mxu0 0.0
    %415 = vmatprep.subr.mxu0 0.0
    %416 = vmatpush1.msra.mxu0 0.0
    %417 = vmatprep.subr.mxu0 0.0
    %418 = vmatpush1.msra.mxu0 0.0
    %419 = vmatprep.subr.mxu0 0.0
    %420 = vmatpush1.msra.mxu0 0.0
    %421 = vmatprep.subr.mxu0 0.0
    %422 = vmatpush1.msra.mxu0 0.0
    %423 = vmatprep.subr.mxu0 0.0
    %424 = vmatpush1.msra.mxu0 0.0
    %425 = vmatprep.subr.mxu0 0.0
    %426 = vmatpush1.msra.mxu0 0.0
    %427 = vmatprep.subr.mxu0 0.0
    %428 = vmatpush1.msra.mxu0 0.0
    %429 = vmatprep.subr.mxu0 0.0
    %430 = vmatpush1.msra.mxu0 0.0
    %431 = vmatprep.subr.mxu0 0.0
    %432 = vmatpush1.msra.mxu0 0.0
    %433 = vmatprep.subr.mxu0 0.0
    %434 = vmatpush1.msra.mxu0 0.0
    %435 = vmatprep.subr.mxu0 0.0
    %436 = vmatpush1.msra.mxu0 0.0
    %437 = vmatprep.subr.mxu0 0.0
    %438 = vmatpush1.msra.mxu0 0.0
    %439 = vmatprep.subr.mxu0 0.0
    %440 = vmatpush1.msra.mxu0 0.0
    %441 = vmatprep.subr.mxu0 0.0
    %442 = vmatpush1.msra.mxu0 0.0
    %443 = vmatprep.subr.mxu0 0.0
    %444 = vmatpush1.msra.mxu0 0.0
    %445 = vmatprep.subr.mxu0 0.0
    %446 = vmatpush1.msra.mxu0 0.0
    %447 = vmatprep.subr.mxu0 0.0
    %448 = vmatpush1.msra.mxu0 0.0
    %449 = vmatprep.subr.mxu0 0.0
    %450 = vmatpush1.msra.mxu0 0.0
    %451 = vmatprep.subr.mxu0 0.0
    %452 = vmatpush1.msra.mxu0 0.0
    %453 = vmatprep.subr.mxu0 0.0
    %454 = vmatpush1.msra.mxu0 0.0
    %455 = vmatprep.subr.mxu0 0.0
    %456 = vmatpush1.msra.mxu0 0.0
    %457 = vmatprep.subr.mxu0 0.0
    %458 = vmatpush1.msra.mxu0 0.0
    %459 = vmatprep.subr.mxu0 0.0
    %460 = vmatpush1.msra.mxu0 0.0
    %461 = vmatprep.subr.mxu0 0.0
    %462 = vmatpush1.msra.mxu0 0.0
    %463 = vmatprep.subr.mxu0 0.0
    %464 = vmatpush1.msra.mxu0 0.0
    %465 = vmatprep.subr.mxu0 0.0
    %466 = vmatpush1.msra.mxu0 0.0
    %467 = vmatprep.subr.mxu0 0.0
    %468 = vmatpush1.msra.mxu0 0.0
    %469 = vmatprep.mubr.f32.mxu0 0.0
    %470 = vmatmul.mubr.f32.gmra.mrb[0].mxu0 %v193
    %v471 = vpop.f32.mrb[0].mxu0
    %v472 = vadd.f32 %v402, %v471
    %v473 = vpop.f32.mrb[0].mxu0
    %474 = vdwg.mxu0
    %vm475 = vcmask 254976
    %v476 = vsel %vm475, %v472, 0.0
    %477 = vadd.xlane.f32.xlu0 %v476
    %v478 = vpop.xlane.xlu0 %477
    %v479 = vrcp.pop 32.0
    %v480 = vmul.f32 %v478, %v479
    %v481 = vsub.f32 %v472, %v480
    %v482 = vmul.f32 %v481, %v481
    %v483 = vsel %vm475, %v482, 0.0
    %484 = vadd.xlane.f32.xlu0 %v483
    %v485 = vpop.xlane.xlu0 %484
    %v486 = vmul.f32 %v485, %v479
    %v487 = vadd.f32 %v486, 1e-05
    %v488 = vrsqrt.pop %v487
    %v489 = vmul.f32 %v481, %v488
    %v490 = vld [vmem:[%s3] sm:$0x1]
    %v492 = vlaneseq
    %v493 = vshrl.u32 %v492, 7
    %v494 = vsub.s32 0, %v493
    %v495 = vrot.slane %v490, %v494
    %v497 = vmul.f32 %v489, %v495
    %v498 = vld [vmem:[%s4] sm:$0x1]
    %v500 = vlaneseq
    %v501 = vshrl.u32 %v500, 7
    %v502 = vsub.s32 0, %v501
    %v503 = vrot.slane %v498, %v502
    %v505 = vadd.f32 %v497, %v503
    %v506 = vtanh.pop %v505
    %v507 = vld [vmem:[%s5] sm:$0xff]
    %v508 = vld [vmem:[%s5 + $0x8] sm:$0xff]
    %v509 = vld [vmem:[%s5 + $0x10] sm:$0xff]
    %v510 = vld [vmem:[%s5 + $0x18] sm:$0xff]
    %v511 = vld [vmem:[%s6] sm:$0x1]
    %v513 = vlaneseq
    %v514 = vshrl.u32 %v513, 7
    %v515 = vsub.s32 0, %v514
    %v516 = vrot.slane %v511, %v515
    %v519 = vsel %vm192, %v506, 0
    %521 = vmatprep.subr.mxu0 0.0
    %522 = vmatpush1.msra.mxu0 %v507
    %523 = vmatprep.subr.mxu0 0.0
    %524 = vmatpush1.msra.mxu0 %v508
    %525 = vmatprep.subr.mxu0 0.0
    %526 = vmatpush1.msra.mxu0 %v509
    %527 = vmatprep.subr.mxu0 0.0
    %528 = vmatpush1.msra.mxu0 %v510
    %529 = vmatprep.subr.mxu0 0.0
    %530 = vmatpush1.msra.mxu0 0.0
    %531 = vmatprep.subr.mxu0 0.0
    %532 = vmatpush1.msra.mxu0 0.0
    %533 = vmatprep.subr.mxu0 0.0
    %534 = vmatpush1.msra.mxu0 0.0
    %535 = vmatprep.subr.mxu0 0.0
    %536 = vmatpush1.msra.mxu0 0.0
    %537 = vmatprep.subr.mxu0 0.0
    %538 = vmatpush1.msra.mxu0 0.0
    %539 = vmatprep.subr.mxu0 0.0
    %540 = vmatpush1.msra.mxu0 0.0
    %541 = vmatprep.subr.mxu0 0.0
    %542 = vmatpush1.msra.mxu0 0.0
    %543 = vmatprep.subr.mxu0 0.0
    %544 = vmatpush1.msra.mxu0 0.0
    %545 = vmatprep.subr.mxu0 0.0
    %546 = vmatpush1.msra.mxu0 0.0
    %547 = vmatprep.subr.mxu0 0.0
    %548 = vmatpush1.msra.mxu0 0.0
    %549 = vmatprep.subr.mxu0 0.0
    %550 = vmatpush1.msra.mxu0 0.0
    %551 = vmatprep.subr.mxu0 0.0
    %552 = vmatpush1.msra.mxu0 0.0
    %553 = vmatprep.subr.mxu0 0.0
    %554 = vmatpush1.msra.mxu0 0.0
    %555 = vmatprep.subr.mxu0 0.0
    %556 = vmatpush1.msra.mxu0 0.0
    %557 = vmatprep.subr.mxu0 0.0
    %558 = vmatpush1.msra.mxu0 0.0
    %559 = vmatprep.subr.mxu0 0.0
    %560 = vmatpush1.msra.mxu0 0.0
    %561 = vmatprep.subr.mxu0 0.0
    %562 = vmatpush1.msra.mxu0 0.0
    %563 = vmatprep.subr.mxu0 0.0
    %564 = vmatpush1.msra.mxu0 0.0
    %565 = vmatprep.subr.mxu0 0.0
    %566 = vmatpush1.msra.mxu0 0.0
    %567 = vmatprep.subr.mxu0 0.0
    %568 = vmatpush1.msra.mxu0 0.0
    %569 = vmatprep.subr.mxu0 0.0
    %570 = vmatpush1.msra.mxu0 0.0
    %571 = vmatprep.subr.mxu0 0.0
    %572 = vmatpush1.msra.mxu0 0.0
    %573 = vmatprep.subr.mxu0 0.0
    %574 = vmatpush1.msra.mxu0 0.0
    %575 = vmatprep.subr.mxu0 0.0
    %576 = vmatpush1.msra.mxu0 0.0
    %577 = vmatprep.subr.mxu0 0.0
    %578 = vmatpush1.msra.mxu0 0.0
    %579 = vmatprep.subr.mxu0 0.0
    %580 = vmatpush1.msra.mxu0 0.0
    %581 = vmatprep.subr.mxu0 0.0
    %582 = vmatpush1.msra.mxu0 0.0
    %583 = vmatprep.subr.mxu0 0.0
    %584 = vmatpush1.msra.mxu0 0.0
    %585 = vmatprep.mubr.f32.mxu0 0.0
    %586 = vmatmul.mubr.f32.gmra.mrb[0].mxu0 %v519
    %v587 = vpop.f32.mrb[0].mxu0
    %v588 = vadd.f32 %v516, %v587
    %v589 = vpop.f32.mrb[0].mxu0
    %590 = vdwg.mxu0
    %v591 = vmax.f32 %v588, 0.0
    %v592 = vld [vmem:[%s7] sm:$0xff]
    %v593 = vld [vmem:[%s7 + $0x8] sm:$0xff]
    %v594 = vld [vmem:[%s7 + $0x10] sm:$0xff]
    %v595 = vld [vmem:[%s7 + $0x18] sm:$0xff]
    %v596 = vld [vmem:[%s8] sm:$0x1]
    %v598 = vlaneseq
    %v599 = vshrl.u32 %v598, 7
    %v600 = vsub.s32 0, %v599
    %v601 = vrot.slane %v596, %v600
    %v604 = vsel %vm192, %v591, 0
    %606 = vmatprep.subr.mxu0 0.0
    %607 = vmatpush1.msra.mxu0 %v592
    %608 = vmatprep.subr.mxu0 0.0
    %609 = vmatpush1.msra.mxu0 %v593
    %610 = vmatprep.subr.mxu0 0.0
    %611 = vmatpush1.msra.mxu0 %v594
    %612 = vmatprep.subr.mxu0 0.0
    %613 = vmatpush1.msra.mxu0 %v595
    %614 = vmatprep.subr.mxu0 0.0
    %615 = vmatpush1.msra.mxu0 0.0
    %616 = vmatprep.subr.mxu0 0.0
    %617 = vmatpush1.msra.mxu0 0.0
    %618 = vmatprep.subr.mxu0 0.0
    %619 = vmatpush1.msra.mxu0 0.0
    %620 = vmatprep.subr.mxu0 0.0
    %621 = vmatpush1.msra.mxu0 0.0
    %622 = vmatprep.subr.mxu0 0.0
    %623 = vmatpush1.msra.mxu0 0.0
    %624 = vmatprep.subr.mxu0 0.0
    %625 = vmatpush1.msra.mxu0 0.0
    %626 = vmatprep.subr.mxu0 0.0
    %627 = vmatpush1.msra.mxu0 0.0
    %628 = vmatprep.subr.mxu0 0.0
    %629 = vmatpush1.msra.mxu0 0.0
    %630 = vmatprep.subr.mxu0 0.0
    %631 = vmatpush1.msra.mxu0 0.0
    %632 = vmatprep.subr.mxu0 0.0
    %633 = vmatpush1.msra.mxu0 0.0
    %634 = vmatprep.subr.mxu0 0.0
    %635 = vmatpush1.msra.mxu0 0.0
    %636 = vmatprep.subr.mxu0 0.0
    %637 = vmatpush1.msra.mxu0 0.0
    %638 = vmatprep.subr.mxu0 0.0
    %639 = vmatpush1.msra.mxu0 0.0
    %640 = vmatprep.subr.mxu0 0.0
    %641 = vmatpush1.msra.mxu0 0.0
    %642 = vmatprep.subr.mxu0 0.0
    %643 = vmatpush1.msra.mxu0 0.0
    %644 = vmatprep.subr.mxu0 0.0
    %645 = vmatpush1.msra.mxu0 0.0
    %646 = vmatprep.subr.mxu0 0.0
    %647 = vmatpush1.msra.mxu0 0.0
    %648 = vmatprep.subr.mxu0 0.0
    %649 = vmatpush1.msra.mxu0 0.0
    %650 = vmatprep.subr.mxu0 0.0
    %651 = vmatpush1.msra.mxu0 0.0
    %652 = vmatprep.subr.mxu0 0.0
    %653 = vmatpush1.msra.mxu0 0.0
    %654 = vmatprep.subr.mxu0 0.0
    %655 = vmatpush1.msra.mxu0 0.0
    %656 = vmatprep.subr.mxu0 0.0
    %657 = vmatpush1.msra.mxu0 0.0
    %658 = vmatprep.subr.mxu0 0.0
    %659 = vmatpush1.msra.mxu0 0.0
    %660 = vmatprep.subr.mxu0 0.0
    %661 = vmatpush1.msra.mxu0 0.0
    %662 = vmatprep.subr.mxu0 0.0
    %663 = vmatpush1.msra.mxu0 0.0
    %664 = vmatprep.subr.mxu0 0.0
    %665 = vmatpush1.msra.mxu0 0.0
    %666 = vmatprep.subr.mxu0 0.0
    %667 = vmatpush1.msra.mxu0 0.0
    %668 = vmatprep.subr.mxu0 0.0
    %669 = vmatpush1.msra.mxu0 0.0
    %670 = vmatprep.mubr.f32.mxu0 0.0
    %671 = vmatmul.mubr.f32.gmra.mrb[0].mxu0 %v604
    %v672 = vpop.f32.mrb[0].mxu0
    %v673 = vadd.f32 %v601, %v672
    %v674 = vpop.f32.mrb[0].mxu0
    %675 = vdwg.mxu0
    %v676 = vmax.f32 %v673, 0.0
    %v677 = vld [vmem:[%s9] sm:$0xff]
    %v678 = vld [vmem:[%s9 + $0x8] sm:$0xff]
    %v679 = vld [vmem:[%s9 + $0x10] sm:$0xff]
    %v680 = vld [vmem:[%s9 + $0x18] sm:$0xff]
    %v681 = vld [vmem:[%s9 + $0x20] sm:$0xff]
    %v682 = vld [vmem:[%s9 + $0x28] sm:$0xff]
    %v683 = vld [vmem:[%s9 + $0x30] sm:$0xff]
    %v684 = vld [vmem:[%s9 + $0x38] sm:$0xff]
    %v685 = vld [vmem:[%s10] sm:$0x3]
    %v687 = vlaneseq
    %v688 = vshrl.u32 %v687, 7
    %v689 = vsub.s32 0, %v688
    %v690 = vrot.slane %v685, %v689
    %v691 = vlaneseq
    %v692 = vshrl.u32 %v691, 7
    %v693 = vsub.s32 1, %v692
    %v694 = vrot.slane %v685, %v693
    %v698 = vsel %vm192, %v676, 0
    %700 = vmatprep.subr.mxu0 %v678
    %701 = vmatpush1.msra.mxu0 %v677
    %702 = vmatprep.subr.mxu0 %v680
    %703 = vmatpush1.msra.mxu0 %v679
    %704 = vmatprep.subr.mxu0 %v682
    %705 = vmatpush1.msra.mxu0 %v681
    %706 = vmatprep.subr.mxu0 %v684
    %707 = vmatpush1.msra.mxu0 %v683
    %708 = vmatprep.subr.mxu0 0.0
    %709 = vmatpush1.msra.mxu0 0.0
    %710 = vmatprep.subr.mxu0 0.0
    %711 = vmatpush1.msra.mxu0 0.0
    %712 = vmatprep.subr.mxu0 0.0
    %713 = vmatpush1.msra.mxu0 0.0
    %714 = vmatprep.subr.mxu0 0.0
    %715 = vmatpush1.msra.mxu0 0.0
    %716 = vmatprep.subr.mxu0 0.0
    %717 = vmatpush1.msra.mxu0 0.0
    %718 = vmatprep.subr.mxu0 0.0
    %719 = vmatpush1.msra.mxu0 0.0
    %720 = vmatprep.subr.mxu0 0.0
    %721 = vmatpush1.msra.mxu0 0.0
    %722 = vmatprep.subr.mxu0 0.0
    %723 = vmatpush1.msra.mxu0 0.0
    %724 = vmatprep.subr.mxu0 0.0
    %725 = vmatpush1.msra.mxu0 0.0
    %726 = vmatprep.subr.mxu0 0.0
    %727 = vmatpush1.msra.mxu0 0.0
    %728 = vmatprep.subr.mxu0 0.0
    %729 = vmatpush1.msra.mxu0 0.0
    %730 = vmatprep.subr.mxu0 0.0
    %731 = vmatpush1.msra.mxu0 0.0
    %732 = vmatprep.subr.mxu0 0.0
    %733 = vmatpush1.msra.mxu0 0.0
    %734 = vmatprep.subr.mxu0 0.0
    %735 = vmatpush1.msra.mxu0 0.0
    %736 = vmatprep.subr.mxu0 0.0
    %737 = vmatpush1.msra.mxu0 0.0
    %738 = vmatprep.subr.mxu0 0.0
    %739 = vmatpush1.msra.mxu0 0.0
    %740 = vmatprep.subr.mxu0 0.0
    %741 = vmatpush1.msra.mxu0 0.0
    %742 = vmatprep.subr.mxu0 0.0
    %743 = vmatpush1.msra.mxu0 0.0
    %744 = vmatprep.subr.mxu0 0.0
    %745 = vmatpush1.msra.mxu0 0.0
    %746 = vmatprep.subr.mxu0 0.0
    %747 = vmatpush1.msra.mxu0 0.0
    %748 = vmatprep.subr.mxu0 0.0
    %749 = vmatpush1.msra.mxu0 0.0
    %750 = vmatprep.subr.mxu0 0.0
    %751 = vmatpush1.msra.mxu0 0.0
    %752 = vmatprep.subr.mxu0 0.0
    %753 = vmatpush1.msra.mxu0 0.0
    %754 = vmatprep.subr.mxu0 0.0
    %755 = vmatpush1.msra.mxu0 0.0
    %756 = vmatprep.subr.mxu0 0.0
    %757 = vmatpush1.msra.mxu0 0.0
    %758 = vmatprep.subr.mxu0 0.0
    %759 = vmatpush1.msra.mxu0 0.0
    %760 = vmatprep.subr.mxu0 0.0
    %761 = vmatpush1.msra.mxu0 0.0
    %762 = vmatprep.subr.mxu0 0.0
    %763 = vmatpush1.msra.mxu0 0.0
    %764 = vmatprep.mubr.f32.mxu0 0.0
    %765 = vmatmul.mubr.f32.gmra.mrb[0].mxu0 %v698
    %v766 = vpop.f32.mrb[0].mxu0
    %v767 = vadd.f32 %v690, %v766
    %v768 = vpop.f32.mrb[0].mxu0
    %v769 = vadd.f32 %v694, %v768
    %770 = vdwg.mxu0
    %v771 = vmax.f32 %v769, -20.0
    %v772 = vmin.f32 %v771, 2.0
    %773 = vst [vmem:[#allocation2] sm:$0x3] %v767
    %774 = vst [vmem:[#allocation4] sm:$0x3] %v772
    // Predicated region
    $region46: #{_lambda_.5} parent=1 // pred_check
      _
    $region47: #{_lambda_.5} parent=1 // pred_check_branch
      %776 = sbr.rel (0) target = $region49
    $region48: #{_lambda_.5} parent=1 // pred_region
      %s778 = ssub.s32 32, 32
      %779 = vsyncadd [#allocation3], %s778
      %s781 = sshll.u32 [#allocation2], 4
      %s782 = int_to_ptr.vmem [resolvable:$true] %s781
      %784 = dma.vmem_to_hbm [thread:$0]  %s782, 32, %s11, [#allocation3]
    $region49: #{_lambda_.5} parent=1 // pred_fallthru
      _
    // Predicated region
    $region50: #{_lambda_.5} parent=1 // pred_check
      _
    $region51: #{_lambda_.5} parent=1 // pred_check_branch
      %786 = sbr.rel (0) target = $region53
    $region52: #{_lambda_.5} parent=1 // pred_region
      %s788 = ssub.s32 32, 32
      %789 = vsyncadd [#allocation5], %s788
      %s791 = sshll.u32 [#allocation4], 4
      %s792 = int_to_ptr.vmem [resolvable:$true] %s791
      %794 = dma.vmem_to_hbm [thread:$0]  %s792, 32, %s12, [#allocation5]
    $region53: #{_lambda_.5} parent=1 // pred_fallthru
      _
    // Predicated region
    $region54: #{_lambda_.5} parent=1 // pred_check
      _
    $region55: #{_lambda_.5} parent=1 // pred_check_branch
      %796 = sbr.rel (0) target = $region57
    $region56: #{_lambda_.5} parent=1 // pred_region
      %797 = dma.done [#allocation3], 32
    $region57: #{_lambda_.5} parent=1 // pred_fallthru
      _
    // Predicated region
    $region58: #{_lambda_.5} parent=1 // pred_check
      _
    $region59: #{_lambda_.5} parent=1 // pred_check_branch
      %799 = sbr.rel (0) target = $region61
    $region60: #{_lambda_.5} parent=1 // pred_region
      %800 = dma.done [#allocation5], 32
    $region61: #{_lambda_.5} parent=1 // pred_fallthru
      _
    %801 = vsyncpa [#allocation3], 1
    %802 = vsyncpa [#allocation5], 1

</llo_original>
